<compile_context>
chip_gen: v6e
topology: v6e:2x2x1
jax: 0.10.0
libtpu: 0.0.40
codegen_flags: <defaults>
</compile_context>

<pallas_src>
import functools
import math

import jax
import jax.numpy as jnp
from jax import lax
from jax.experimental import pallas as pl
from jax.experimental.pallas import tpu as pltpu


# ---------------------------------------------------------------------------
# small helpers
# ---------------------------------------------------------------------------
def _nr_reciprocal(x):
    """EUP vrcp seed + one Newton-Raphson step: ~f32-exact, no divide."""
    r = pl.reciprocal(x, approx=True)
    return r * (2.0 - x * r)


def _qk_scores(q, k, scale, compute_dtype):
    """scores = (q*scale) @ k^T contracting the hidden dim (no K transpose)."""
    q = (q * scale).astype(compute_dtype)
    k = k.astype(compute_dtype)
    return lax.dot_general(
        q, k,
        dimension_numbers=(((2,), (2,)), ((0,), (0,))),
        preferred_element_type=jnp.float32,
    )


# ---------------------------------------------------------------------------
# kernel bodies
# ---------------------------------------------------------------------------
def _attn_fullk_kernel(q_ref, k_ref, v_ref, out_ref, attn_ref, *,
                       scale, compute_dtype):
    """Full-T_k block: materializes the softmax probs (return_attention=True)."""
    s = _qk_scores(q_ref[...], k_ref[...], scale, compute_dtype)   # (bblk,tq,T_k) f32
    m = jnp.max(s, axis=-1, keepdims=True)
    e = jnp.exp(s - m)
    denom = jnp.sum(e, axis=-1, keepdims=True)
    p = e * _nr_reciprocal(denom)
    attn_ref[...] = p.astype(attn_ref.dtype)

    out = lax.dot_general(
        p.astype(compute_dtype), v_ref[...].astype(compute_dtype),
        dimension_numbers=(((2,), (1,)), ((0,), (0,))),
        preferred_element_type=jnp.float32,
    )
    out_ref[...] = out.astype(out_ref.dtype)


def _attn_flash_kernel(q_ref, k_ref, v_ref, out_ref, m_sc, l_sc, acc_sc, *,
                       scale, compute_dtype):
    """Flash-style online softmax over a tiled T_k axis (return_attention=False)."""
    kk = pl.program_id(2)

    @pl.when(kk == 0)
    def _():
        m_sc[...] = jnp.full(m_sc.shape, -jnp.inf, dtype=m_sc.dtype)
        l_sc[...] = jnp.zeros(l_sc.shape, dtype=l_sc.dtype)
        acc_sc[...] = jnp.zeros(acc_sc.shape, dtype=acc_sc.dtype)

    s = _qk_scores(q_ref[...], k_ref[...], scale, compute_dtype)   # (bblk,tq,tk) f32
    m_prev = m_sc[...]
    m_new = jnp.maximum(m_prev, jnp.max(s, axis=-1, keepdims=True))
    alpha = jnp.exp(m_prev - m_new)
    p = jnp.exp(s - m_new)
    l_sc[...] = alpha * l_sc[...] + jnp.sum(p, axis=-1, keepdims=True)
    pv = lax.dot_general(
        p.astype(compute_dtype), v_ref[...].astype(compute_dtype),
        dimension_numbers=(((2,), (1,)), ((0,), (0,))),
        preferred_element_type=jnp.float32,
    )
    acc_sc[...] = alpha * acc_sc[...] + pv
    m_sc[...] = m_new

    @pl.when(kk == pl.num_programs(2) - 1)
    def _():
        out_ref[...] = (acc_sc[...] * _nr_reciprocal(l_sc[...])).astype(out_ref.dtype)


# ---------------------------------------------------------------------------
# VMEM budget + tile selection
# ---------------------------------------------------------------------------
_FALLBACK_VMEM_CAP = 64 * 1024 * 1024   # conservative: v7x per-TC physical VMEM


def _vmem_capacity_bytes():
    try:
        cap = getattr(pltpu.get_tpu_info(), "vmem_capacity_bytes", None)
        if cap:
            return int(cap)
    except Exception:
        pass
    return _FALLBACK_VMEM_CAP


def _aligned_divisors(n, align):
    """Divisors of n that are multiples of `align` (or n itself), descending."""
    out = []
    for d in range(n, 0, -1):
        if n % d == 0 and (d % align == 0 or d == n):
            out.append(d)
    return out


def _pick_fullk_tiles(B, T_q, T_k, D, Dv, in_isz, attn_isz, budget):
    """(bblk, tq) for the full-T_k probs path, sized against a VMEM budget."""
    def nbytes(bblk, tq):
        io = 2 * (bblk * tq * D * in_isz        # q    (x2: double-buffered)
                  + bblk * T_k * D * in_isz     # k
                  + bblk * T_k * Dv * in_isz    # v
                  + bblk * tq * Dv * in_isz     # out
                  + bblk * tq * T_k * attn_isz)  # attn probs
        tmp = 3 * bblk * tq * T_k * 4           # s / e / p f32 temporaries
        return io + tmp

    b_divs = [d for d in range(min(B, 64), 0, -1) if B % d == 0]
    tq_cands = _aligned_divisors(T_q, 8)
    combos = sorted(((bb, tq) for bb in b_divs for tq in tq_cands),
                    key=lambda c: (c[0] * c[1], c[1] % 128 == 0, c[1]),
                    reverse=True)
    bblk, tq = combos[-1]                        # smallest combo as fallback
    for bb, tqq in combos:
        if nbytes(bb, tqq) <= budget:
            bblk, tq = bb, tqq
            break
    return bblk, tq


def _pick_flash_tiles(B, T_q, T_k, D, Dv, in_isz, budget):
    """(bblk, tq, tk) for the flash path: maximize tq (fewest K/V re-streams),
    then bblk; prefer MXU-aligned (256/128) K tiles."""
    def nbytes(bblk, tq, tk):
        io = 2 * (bblk * tq * D * in_isz
                  + bblk * tk * D * in_isz
                  + bblk * tk * Dv * in_isz
                  + bblk * tq * Dv * in_isz)
        scratch = bblk * tq * (Dv + 2) * 4       # m / l / acc f32 scratch
        tmp = 3 * bblk * tq * tk * 4             # s / p f32 temporaries
        return io + scratch + tmp

    b_divs = [d for d in range(min(B, 64), 0, -1) if B % d == 0]
    tq_cands = sorted(_aligned_divisors(T_q, 8), reverse=True)
    tk_cands = sorted(_aligned_divisors(T_k, 8),
                      key=lambda tk: (tk % 256 == 0, tk % 128 == 0, tk),
                      reverse=True)

    best = None
    for tq in tq_cands:
        if best is not None:
            break
        for bb in b_divs:
            if best is not None:
                break
            for tk in tk_cands:
                if nbytes(bb, tq, tk) <= budget:
                    best = (bb, tq, tk)
                    break
    if best is None:
        best = (1, min(tq_cands), min(tk_cands))
    return best


# ---------------------------------------------------------------------------
# wrapper
# ---------------------------------------------------------------------------
def multihead_attention(key, value, query, num_hidden_k, *,
                        return_attention=True,
                        attention_dtype=None,
                        use_bf16_matmul=False):
    """Pallas equivalent of MultiheadAttention.forward(key, value, query)."""
    B, T_k, D = key.shape
    Bv, T_kv, Dv = value.shape
    Bq, T_q, Dq = query.shape
    assert Bv == B and Bq == B and T_kv == T_k and Dq == D
    assert D == num_hidden_k, "hidden dim must match num_hidden_k (scale factor)"

    scale = 1.0 / math.sqrt(num_hidden_k)
    in_dtype = query.dtype
    compute_dtype = (jnp.bfloat16 if (use_bf16_matmul and in_dtype == jnp.float32)
                     else in_dtype)
    attn_dtype = jnp.dtype(attention_dtype) if attention_dtype is not None else in_dtype
    in_isz = jnp.dtype(in_dtype).itemsize
    attn_isz = jnp.dtype(attn_dtype).itemsize

    # VMEM budget: adapt to the generation (v5e/v6e 128 MiB, v7x 64 MiB per TC).
    vmem_cap = _vmem_capacity_bytes()
    vmem_limit = min(int(vmem_cap * 0.75), 100 * 1024 * 1024)
    tile_budget = int(vmem_limit * 0.9)

    flops = 2 * B * T_q * T_k * (D + Dv)
    transcendentals = B * T_q * T_k

    if return_attention:
        assert B % 4 == 0, "reference module reshapes attention with B // 4"
        bblk, tq = _pick_fullk_tiles(B, T_q, T_k, D, Dv, in_isz, attn_isz, tile_budget)
        # Invariant: keep the T_q axis innermost so the K/V index_maps (which
        # ignore i) return the same block index across consecutive steps and
        # Pallas skips re-DMAing K/V per query tile.
        grid = (B // bblk, T_q // tq)
        bytes_accessed = ((B * T_q * D + B * T_k * D + B * T_k * Dv + B * T_q * Dv)
                          * in_isz + B * T_q * T_k * attn_isz)
        cost = pl.CostEstimate(flops=flops, transcendentals=transcendentals,
                               bytes_accessed=int(bytes_accessed))

        kernel = functools.partial(_attn_fullk_kernel, scale=scale,
                                   compute_dtype=compute_dtype)
        result, attn = pl.pallas_call(
            kernel,
            out_shape=(
                jax.ShapeDtypeStruct((B, T_q, Dv), in_dtype),
                jax.ShapeDtypeStruct((B, T_q, T_k), attn_dtype),
            ),
            grid_spec=pltpu.PrefetchScalarGridSpec(
                num_scalar_prefetch=0,
                grid=grid,
                in_specs=[
                    pl.BlockSpec((bblk, tq, D), lambda b, i: (b, i, 0)),    # query
                    pl.BlockSpec((bblk, T_k, D), lambda b, i: (b, 0, 0)),   # key
                    pl.BlockSpec((bblk, T_k, Dv), lambda b, i: (b, 0, 0)),  # value
                ],
                out_specs=[
                    pl.BlockSpec((bblk, tq, Dv), lambda b, i: (b, i, 0)),
                    pl.BlockSpec((bblk, tq, T_k), lambda b, i: (b, i, 0)),
                ],
            ),
            compiler_params=pltpu.CompilerParams(
                dimension_semantics=("parallel", "parallel"),
                vmem_limit_bytes=vmem_limit,
            ),
            cost_estimate=cost,
        )(query, key, value)
        # torch: self.attention = dropout(attn).view(B // 4, 4, -1, T_k)
        # (dropout = identity in eval)
        attention = attn.reshape(B // 4, 4, T_q, T_k)
        return result, attention

    # ---- fast path: no probs writeback, flash-style T_k tiling --------------
    bblk, tq, tk = _pick_flash_tiles(B, T_q, T_k, D, Dv, in_isz, tile_budget)
    n_q_tiles = T_q // tq
    bytes_accessed = (B * T_q * D * in_isz
                      + n_q_tiles * B * T_k * (D + Dv) * in_isz
                      + B * T_q * Dv * in_isz)
    cost = pl.CostEstimate(flops=flops, transcendentals=transcendentals,
                           bytes_accessed=int(bytes_accessed))

    kernel = functools.partial(_attn_flash_kernel, scale=scale,
                               compute_dtype=compute_dtype)
    result = pl.pallas_call(
        kernel,
        out_shape=jax.ShapeDtypeStruct((B, T_q, Dv), in_dtype),
        grid_spec=pltpu.PrefetchScalarGridSpec(
            num_scalar_prefetch=0,
            grid=(B // bblk, T_q // tq, T_k // tk),
            in_specs=[
                pl.BlockSpec((bblk, tq, D), lambda b, i, kk: (b, i, 0)),    # query
                pl.BlockSpec((bblk, tk, D), lambda b, i, kk: (b, kk, 0)),   # key
                pl.BlockSpec((bblk, tk, Dv), lambda b, i, kk: (b, kk, 0)),  # value
            ],
            out_specs=pl.BlockSpec((bblk, tq, Dv), lambda b, i, kk: (b, i, 0)),
            scratch_shapes=[
                pltpu.VMEM((bblk, tq, 1), jnp.float32),   # running max
                pltpu.VMEM((bblk, tq, 1), jnp.float32),   # running denom
                pltpu.VMEM((bblk, tq, Dv), jnp.float32),  # output accumulator
            ],
        ),
        compiler_params=pltpu.CompilerParams(
            dimension_semantics=("parallel", "parallel", "arbitrary"),
            vmem_limit_bytes=vmem_limit,
        ),
        cost_estimate=cost,
    )(query, key, value)
    return result, None


# ---------------------------------------------------------------------------
# pure-JAX reference (high-precision matmuls so the f32 comparison is exact)
# ---------------------------------------------------------------------------
def _reference(key, value, query, num_hidden_k):
    hp = jax.lax.Precision.HIGHEST
    s = jnp.einsum("bqd,bkd->bqk", query, key, precision=hp) / math.sqrt(num_hidden_k)
    p = jax.nn.softmax(s, axis=-1)
    out = jnp.einsum("bqk,bkd->bqd", p, value, precision=hp)
    attn = p.reshape(key.shape[0] // 4, 4, query.shape[1], key.shape[1])
    return out, attn


if __name__ == "__main__":
    num_hidden_k = 32
    B, T_q, T_k, D, Dv = 8, 16, 32, num_hidden_k, 32

    k0 = jax.random.PRNGKey(0)
    kk, kv, kq = jax.random.split(k0, 3)
    key = jax.random.normal(kk, (B, T_k, D), dtype=jnp.float32)
    value = jax.random.normal(kv, (B, T_k, Dv), dtype=jnp.float32)
    query = jax.random.normal(kq, (B, T_q, D), dtype=jnp.float32)

    ref_result, ref_attention = _reference(key, value, query, num_hidden_k)

    # path 1: result + attention probs (matches the torch forward return)
    result, attention = multihead_attention(key, value, query, num_hidden_k)
    result = jax.block_until_ready(result)
    attention = jax.block_until_ready(attention)
    assert result.shape == (B, T_q, Dv)
    assert attention.shape == (B // 4, 4, T_q, T_k)
    assert jnp.allclose(result, ref_result, atol=1e-4, rtol=1e-4)
    assert jnp.allclose(attention, ref_attention, atol=1e-4, rtol=1e-4)

    # path 2: result-only flash path (no O(T_q*T_k) probs writeback)
    result_only, none_attn = multihead_attention(
        key, value, query, num_hidden_k, return_attention=False)
    result_only = jax.block_until_ready(result_only)
    assert none_attn is None
    assert jnp.allclose(result_only, ref_result, atol=1e-4, rtol=1e-4)

    print("KERNEL_OK")
</pallas_src>

<mosaic_0001>
module attributes {stable_mosaic.version = 11 : i64} {
  func.func @_attn_fullk_kernel(%arg0: i32, %arg1: i32, %arg2: memref<8x16x32xf32, #tpu.memory_space<vmem>>, %arg3: memref<8x32x32xf32, #tpu.memory_space<vmem>>, %arg4: memref<8x32x32xf32, #tpu.memory_space<vmem>>, %arg5: memref<8x16x32xf32, #tpu.memory_space<vmem>>, %arg6: memref<8x16x32xf32, #tpu.memory_space<vmem>>) attributes {dimension_semantics = [#tpu.dimension_semantics<parallel>, #tpu.dimension_semantics<parallel>], iteration_bounds = array<i64: 1, 1>, scalar_prefetch = 0 : i64, scratch_operands = 0 : i64, tpu.core_type = #tpu.core_type<tc>, window_params = [{transform_indices = @transform_0, window_bounds = array<i64: 8, 16, 32>}, {transform_indices = @transform_1, window_bounds = array<i64: 8, 32, 32>}, {transform_indices = @transform_2, window_bounds = array<i64: 8, 32, 32>}, {transform_indices = @transform_3, window_bounds = array<i64: 8, 16, 32>}, {transform_indices = @transform_4, window_bounds = array<i64: 8, 16, 32>}]} {
    %c0 = arith.constant 0 : index
    %c0_0 = arith.constant 0 : index
    %c0_1 = arith.constant 0 : index
    %0 = vector.load %arg2[%c0, %c0_0, %c0_1] : memref<8x16x32xf32, #tpu.memory_space<vmem>>, vector<8x16x32xf32>
    %c0_2 = arith.constant 0 : index
    %c0_3 = arith.constant 0 : index
    %c0_4 = arith.constant 0 : index
    %1 = vector.load %arg3[%c0_2, %c0_3, %c0_4] : memref<8x32x32xf32, #tpu.memory_space<vmem>>, vector<8x32x32xf32>
    %cst = arith.constant 0.176776692 : f32
    %2 = vector.broadcast %cst : f32 to vector<8x16x32xf32>
    %3 = arith.mulf %0, %2 : vector<8x16x32xf32>
    %cst_5 = arith.constant dense<0.000000e+00> : vector<8x16x32xf32>
    %4 = tpu.matmul %3, %1, %cst_5 {dimension_numbers = #tpu.dot_dimension_numbers<[2], [2], [1], [1], [0, 0, 0, 1, 1, 1], [0], [0]>} : vector<8x16x32xf32>, vector<8x32x32xf32>, vector<8x16x32xf32> -> vector<8x16x32xf32>
    %cst_6 = arith.constant dense<0xFF800000> : vector<8x16xf32>
    %5 = vector.multi_reduction <maximumf>, %4, %cst_6 [2] : vector<8x16x32xf32> to vector<8x16xf32>
    %6 = vector.shape_cast %5 : vector<8x16xf32> to vector<8x16x1xf32>
    %7 = vector.broadcast %6 : vector<8x16x1xf32> to vector<8x16x32xf32>
    %8 = arith.subf %4, %7 : vector<8x16x32xf32>
    %9 = math.exp %8 : vector<8x16x32xf32>
    %cst_7 = arith.constant dense<0.000000e+00> : vector<8x16xf32>
    %10 = vector.multi_reduction <add>, %9, %cst_7 [2] : vector<8x16x32xf32> to vector<8x16xf32>
    %11 = vector.shape_cast %10 : vector<8x16xf32> to vector<8x16x1xf32>
    %12 = tpu.reciprocal %11 {approx = true} : vector<8x16x1xf32> -> vector<8x16x1xf32>
    %13 = arith.mulf %11, %12 : vector<8x16x1xf32>
    %cst_8 = arith.constant 2.000000e+00 : f32
    %14 = vector.broadcast %cst_8 : f32 to vector<8x16x1xf32>
    %15 = arith.subf %14, %13 : vector<8x16x1xf32>
    %16 = arith.mulf %12, %15 : vector<8x16x1xf32>
    %17 = vector.broadcast %16 : vector<8x16x1xf32> to vector<8x16x32xf32>
    %18 = arith.mulf %9, %17 : vector<8x16x32xf32>
    %c0_9 = arith.constant 0 : index
    %c0_10 = arith.constant 0 : index
    %c0_11 = arith.constant 0 : index
    %19 = vector.load %arg6[%c0_9, %c0_10, %c0_11] : memref<8x16x32xf32, #tpu.memory_space<vmem>>, vector<8x16x32xf32>
    tpu.vector_store %arg6[%c0_9, %c0_10, %c0_11], %18 {strides = array<i32>} : memref<8x16x32xf32, #tpu.memory_space<vmem>>, vector<8x16x32xf32>,
    %c0_12 = arith.constant 0 : index
    %c0_13 = arith.constant 0 : index
    %c0_14 = arith.constant 0 : index
    %20 = vector.load %arg4[%c0_12, %c0_13, %c0_14] : memref<8x32x32xf32, #tpu.memory_space<vmem>>, vector<8x32x32xf32>
    %cst_15 = arith.constant dense<0.000000e+00> : vector<8x16x32xf32>
    %21 = tpu.matmul %18, %20, %cst_15 {dimension_numbers = #tpu.dot_dimension_numbers<[2], [1], [1], [2], [0, 0, 0, 1, 1, 2], [0], [0]>} : vector<8x16x32xf32>, vector<8x32x32xf32>, vector<8x16x32xf32> -> vector<8x16x32xf32>
    %c0_16 = arith.constant 0 : index
    %c0_17 = arith.constant 0 : index
    %c0_18 = arith.constant 0 : index
    %22 = vector.load %arg5[%c0_16, %c0_17, %c0_18] : memref<8x16x32xf32, #tpu.memory_space<vmem>>, vector<8x16x32xf32>
    tpu.vector_store %arg5[%c0_16, %c0_17, %c0_18], %21 {strides = array<i32>} : memref<8x16x32xf32, #tpu.memory_space<vmem>>, vector<8x16x32xf32>,
    return
  }
  func.func @transform_0(%arg0: i32, %arg1: i32) -> (i32, i32, i32) {
    %c0_i32 = arith.constant 0 : i32
    %c0_i32_0 = arith.constant 0 : i32
    return %arg0, %arg1, %c0_i32 : i32, i32, i32
  }
  func.func @transform_1(%arg0: i32, %arg1: i32) -> (i32, i32, i32) {
    %c0_i32 = arith.constant 0 : i32
    %c0_i32_0 = arith.constant 0 : i32
    %c0_i32_1 = arith.constant 0 : i32
    return %arg0, %c0_i32, %c0_i32_0 : i32, i32, i32
  }
  func.func @transform_2(%arg0: i32, %arg1: i32) -> (i32, i32, i32) {
    %c0_i32 = arith.constant 0 : i32
    %c0_i32_0 = arith.constant 0 : i32
    %c0_i32_1 = arith.constant 0 : i32
    return %arg0, %c0_i32, %c0_i32_0 : i32, i32, i32
  }
  func.func @transform_3(%arg0: i32, %arg1: i32) -> (i32, i32, i32) {
    %c0_i32 = arith.constant 0 : i32
    %c0_i32_0 = arith.constant 0 : i32
    return %arg0, %arg1, %c0_i32 : i32, i32, i32
  }
  func.func @transform_4(%arg0: i32, %arg1: i32) -> (i32, i32, i32) {
    %c0_i32 = arith.constant 0 : i32
    %c0_i32_0 = arith.constant 0 : i32
    return %arg0, %arg1, %c0_i32 : i32, i32, i32
  }
}

</mosaic_0001>

<llo_original>
// kernel: tpu_custom_call.1
$region0: #{tpu_custom_call.1}
  #allocation0 [shape = 'u32[]', space=smem, size = 0x4, offset = 0x4, fixed_abs, tag = 'smem constant byte address 0x4 - core index']
  #allocation1 [shape = 'u32[144,128]{1,0:T(1,128)}', space=vmem, size = 0x12000, scoped, tag = 'internal scratch']
  %s0 = inlined_call_operand.hbm [shape: f32[8,16,32], index: 0, kind: input, shape index: {}]
  %s1 = inlined_call_operand.hbm [shape: f32[8,32,32], index: 1, kind: input, shape index: {}]
  %s2 = inlined_call_operand.hbm [shape: f32[8,32,32], index: 2, kind: input, shape index: {}]
  %s3 = inlined_call_operand.hbm [shape: f32[8,16,32], index: 3, kind: output, shape index: {0}]
  %s4 = inlined_call_operand.hbm [shape: f32[8,16,32], index: 4, kind: output, shape index: {1}]
  %5 = xla_tuple %s3, %s4
  %s6 = sld [smem:[#allocation0]]
  $region42: #{tpu_custom_call.1} parent=0
    _
  %s8 = ssub.s32 1, %s6
  %s9 = scalar_select 0, %s8, %s6
  $region1: #{tpu_custom_call.1} parent=0
    #allocation2 [shape = 'u8[65536]{0}', space=vmem, size = 0x10000, scoped, tag = 'input window, operand 0, single buffered']
    #allocation3 [shape = 's32[1]{0}', space=sflag, size = 0x4, scoped, tag = 'scoped memory for tpu_custom_call.1']
    #allocation4 [shape = 's32[1]{0}', space=sflag, size = 0x4, scoped, tag = 'scoped memory for tpu_custom_call.1']
    #allocation5 [shape = 'u8[131072]{0}', space=vmem, size = 0x20000, scoped, tag = 'input window, operand 1, single buffered']
    #allocation6 [shape = 's32[1]{0}', space=sflag, size = 0x4, scoped, tag = 'scoped memory for tpu_custom_call.1']
    #allocation7 [shape = 'u8[131072]{0}', space=vmem, size = 0x20000, scoped, tag = 'input window, operand 2, single buffered']
    #allocation8 [shape = 'u8[65536]{0}', space=vmem, size = 0x10000, scoped, tag = 'output window, operand 0, single buffered']
    #allocation9 [shape = 'u8[65536]{0}', space=vmem, size = 0x10000, scoped, tag = 'output window, operand 1, single buffered']
    #allocation10 [shape = 's32[1]{0}', space=sflag, size = 0x4, scoped, tag = 'scoped memory for tpu_custom_call.1']
    %10 = vsyncpa [#allocation3], 0
    %11 = vsyncpa [#allocation6], 0
    %12 = vsyncpa [#allocation4], 0
    %13 = vsyncpa [#allocation10], 0
    // Predicated region
    $region2: #{tpu_custom_call.1} parent=1 // pred_check
      _
    $region3: #{tpu_custom_call.1} parent=1 // pred_check_branch
      %15 = sbr.rel (0) target = $region5
    $region4: #{tpu_custom_call.1} parent=1 // pred_region
      %s17 = ssub.s32 2048, 2048
      %18 = vsyncadd [#allocation3], %s17
      %s19 = sshll.u32 [#allocation2], 4
      %s20 = int_to_ptr.vmem [resolvable:$true] %s19
      %25 = dma.hbm_to_vmem [thread:$0]  %s0, 2048, %s20, [#allocation3], 128, 128, 8
    $region5: #{tpu_custom_call.1} parent=1 // pred_fallthru
      _
    // Predicated region
    $region6: #{tpu_custom_call.1} parent=1 // pred_check
      _
    $region7: #{tpu_custom_call.1} parent=1 // pred_check_branch
      %27 = sbr.rel (0) target = $region9
    $region8: #{tpu_custom_call.1} parent=1 // pred_region
      %s29 = ssub.s32 4096, 4096
      %30 = vsyncadd [#allocation6], %s29
      %s31 = sshll.u32 [#allocation5], 4
      %s32 = int_to_ptr.vmem [resolvable:$true] %s31
      %37 = dma.hbm_to_vmem [thread:$0]  %s1, 4096, %s32, [#allocation6], 128, 128, 8
    $region9: #{tpu_custom_call.1} parent=1 // pred_fallthru
      _
    // Predicated region
    $region10: #{tpu_custom_call.1} parent=1 // pred_check
      _
    $region11: #{tpu_custom_call.1} parent=1 // pred_check_branch
      %39 = sbr.rel (0) target = $region13
    $region12: #{tpu_custom_call.1} parent=1 // pred_region
      %s41 = ssub.s32 4096, 4096
      %42 = vsyncadd [#allocation6], %s41
      %s43 = sshll.u32 [#allocation7], 4
      %s44 = int_to_ptr.vmem [resolvable:$true] %s43
      %49 = dma.hbm_to_vmem [thread:$0]  %s2, 4096, %s44, [#allocation6], 128, 128, 8
    $region13: #{tpu_custom_call.1} parent=1 // pred_fallthru
      _
    // Predicated region
    $region14: #{tpu_custom_call.1} parent=1 // pred_check
      _
    $region15: #{tpu_custom_call.1} parent=1 // pred_check_branch
      %51 = sbr.rel (0) target = $region17
    $region16: #{tpu_custom_call.1} parent=1 // pred_region
      %52 = dma.done [#allocation3], 2048
    $region17: #{tpu_custom_call.1} parent=1 // pred_fallthru
      _
    // Predicated region
    $region18: #{tpu_custom_call.1} parent=1 // pred_check
      _
    $region19: #{tpu_custom_call.1} parent=1 // pred_check_branch
      %54 = sbr.rel (0) target = $region21
    $region20: #{tpu_custom_call.1} parent=1 // pred_region
      %55 = dma.done [#allocation6], 4096
    $region21: #{tpu_custom_call.1} parent=1 // pred_fallthru
      _
    // Predicated region
    $region22: #{tpu_custom_call.1} parent=1 // pred_check
      _
    $region23: #{tpu_custom_call.1} parent=1 // pred_check_branch
      %57 = sbr.rel (0) target = $region25
    $region24: #{tpu_custom_call.1} parent=1 // pred_region
      %58 = dma.done [#allocation6], 4096
    $region25: #{tpu_custom_call.1} parent=1 // pred_fallthru
      _
    %v59 = vld [vmem:[#allocation2] sm:$0xff]
    %v60 = vld [vmem:[#allocation2 + $0x8] sm:$0xff]
    %v61 = vld [vmem:[#allocation2 + $0x10] sm:$0xff]
    %v62 = vld [vmem:[#allocation2 + $0x18] sm:$0xff]
    %v63 = vld [vmem:[#allocation2 + $0x20] sm:$0xff]
    %v64 = vld [vmem:[#allocation2 + $0x28] sm:$0xff]
    %v65 = vld [vmem:[#allocation2 + $0x30] sm:$0xff]
    %v66 = vld [vmem:[#allocation2 + $0x38] sm:$0xff]
    %v67 = vld [vmem:[#allocation2 + $0x40] sm:$0xff]
    %v68 = vld [vmem:[#allocation2 + $0x48] sm:$0xff]
    %v69 = vld [vmem:[#allocation2 + $0x50] sm:$0xff]
    %v70 = vld [vmem:[#allocation2 + $0x58] sm:$0xff]
    %v71 = vld [vmem:[#allocation2 + $0x60] sm:$0xff]
    %v72 = vld [vmem:[#allocation2 + $0x68] sm:$0xff]
    %v73 = vld [vmem:[#allocation2 + $0x70] sm:$0xff]
    %v74 = vld [vmem:[#allocation2 + $0x78] sm:$0xff]
    %v75 = vld [vmem:[#allocation5] sm:$0xff]
    %v76 = vld [vmem:[#allocation5 + $0x8] sm:$0xff]
    %v77 = vld [vmem:[#allocation5 + $0x10] sm:$0xff]
    %v78 = vld [vmem:[#allocation5 + $0x18] sm:$0xff]
    %v79 = vld [vmem:[#allocation5 + $0x20] sm:$0xff]
    %v80 = vld [vmem:[#allocation5 + $0x28] sm:$0xff]
    %v81 = vld [vmem:[#allocation5 + $0x30] sm:$0xff]
    %v82 = vld [vmem:[#allocation5 + $0x38] sm:$0xff]
    %v83 = vld [vmem:[#allocation5 + $0x40] sm:$0xff]
    %v84 = vld [vmem:[#allocation5 + $0x48] sm:$0xff]
    %v85 = vld [vmem:[#allocation5 + $0x50] sm:$0xff]
    %v86 = vld [vmem:[#allocation5 + $0x58] sm:$0xff]
    %v87 = vld [vmem:[#allocation5 + $0x60] sm:$0xff]
    %v88 = vld [vmem:[#allocation5 + $0x68] sm:$0xff]
    %v89 = vld [vmem:[#allocation5 + $0x70] sm:$0xff]
    %v90 = vld [vmem:[#allocation5 + $0x78] sm:$0xff]
    %v91 = vld [vmem:[#allocation5 + $0x80] sm:$0xff]
    %v92 = vld [vmem:[#allocation5 + $0x88] sm:$0xff]
    %v93 = vld [vmem:[#allocation5 + $0x90] sm:$0xff]
    %v94 = vld [vmem:[#allocation5 + $0x98] sm:$0xff]
    %v95 = vld [vmem:[#allocation5 + $0xa0] sm:$0xff]
    %v96 = vld [vmem:[#allocation5 + $0xa8] sm:$0xff]
    %v97 = vld [vmem:[#allocation5 + $0xb0] sm:$0xff]
    %v98 = vld [vmem:[#allocation5 + $0xb8] sm:$0xff]
    %v99 = vld [vmem:[#allocation5 + $0xc0] sm:$0xff]
    %v100 = vld [vmem:[#allocation5 + $0xc8] sm:$0xff]
    %v101 = vld [vmem:[#allocation5 + $0xd0] sm:$0xff]
    %v102 = vld [vmem:[#allocation5 + $0xd8] sm:$0xff]
    %v103 = vld [vmem:[#allocation5 + $0xe0] sm:$0xff]
    %v104 = vld [vmem:[#allocation5 + $0xe8] sm:$0xff]
    %v105 = vld [vmem:[#allocation5 + $0xf0] sm:$0xff]
    %v106 = vld [vmem:[#allocation5 + $0xf8] sm:$0xff]
    %v107 = vmul.f32 %v59, 0.17677669
    %v108 = vmul.f32 %v60, 0.17677669
    %v109 = vmul.f32 %v61, 0.17677669
    %v110 = vmul.f32 %v62, 0.17677669
    %v111 = vmul.f32 %v63, 0.17677669
    %v112 = vmul.f32 %v64, 0.17677669
    %v113 = vmul.f32 %v65, 0.17677669
    %v114 = vmul.f32 %v66, 0.17677669
    %v115 = vmul.f32 %v67, 0.17677669
    %v116 = vmul.f32 %v68, 0.17677669
    %v117 = vmul.f32 %v69, 0.17677669
    %v118 = vmul.f32 %v70, 0.17677669
    %v119 = vmul.f32 %v71, 0.17677669
    %v120 = vmul.f32 %v72, 0.17677669
    %v121 = vmul.f32 %v73, 0.17677669
    %v122 = vmul.f32 %v74, 0.17677669
    %vm123 = vcmask 261120
    %v125 = vsel %vm123, %v107, 0
    %v128 = vsel %vm123, %v108, 0
    %v131 = vsel %vm123, %v75, 0
    %v134 = vsel %vm123, %v76, 0
    %v137 = vsel %vm123, %v77, 0
    %v140 = vsel %vm123, %v78, 0
    %142 = vmatprep.subr.mxu0 0.0
    %143 = vmatpush1.xpose.msra.mxu0 0.0
    %144 = vmatprep.subr.mxu0 0.0
    %145 = vmatpush1.xpose.msra.mxu0 0.0
    %146 = vmatprep.subr.mxu0 0.0
    %147 = vmatpush1.xpose.msra.mxu0 0.0
    %148 = vmatprep.subr.mxu0 0.0
    %149 = vmatpush1.xpose.msra.mxu0 0.0
    %150 = vmatprep.subr.mxu0 0.0
    %151 = vmatpush1.xpose.msra.mxu0 0.0
    %152 = vmatprep.subr.mxu0 0.0
    %153 = vmatpush1.xpose.msra.mxu0 0.0
    %154 = vmatprep.subr.mxu0 0.0
    %155 = vmatpush1.xpose.msra.mxu0 0.0
    %156 = vmatprep.subr.mxu0 0.0
    %157 = vmatpush1.xpose.msra.mxu0 0.0
    %158 = vmatprep.subr.mxu0 0.0
    %159 = vmatpush1.xpose.msra.mxu0 0.0
    %160 = vmatprep.subr.mxu0 0.0
    %161 = vmatpush1.xpose.msra.mxu0 0.0
    %162 = vmatprep.subr.mxu0 0.0
    %163 = vmatpush1.xpose.msra.mxu0 0.0
    %164 = vmatprep.subr.mxu0 0.0
    %165 = vmatpush1.xpose.msra.mxu0 0.0
    %166 = vmatprep.subr.mxu0 0.0
    %167 = vmatpush1.xpose.msra.mxu0 %v140
    %168 = vmatprep.subr.mxu0 0.0
    %169 = vmatpush1.xpose.msra.mxu0 %v137
    %170 = vmatprep.subr.mxu0 0.0
    %171 = vmatpush1.xpose.msra.mxu0 %v134
    %172 = vmatprep.subr.mxu0 0.0
    %173 = vmatpush1.xpose.msra.mxu0 %v131
    %174 = vmatprep.subr.mxu0 0.0
    %175 = vmatpush2.xpose.msra.mxu0 0.0
    %176 = vmatprep.subr.mxu0 0.0
    %177 = vmatpush2.xpose.msra.mxu0 0.0
    %178 = vmatprep.subr.mxu0 0.0
    %179 = vmatpush2.xpose.msra.mxu0 0.0
    %180 = vmatprep.subr.mxu0 0.0
    %181 = vmatpush2.xpose.msra.mxu0 0.0
    %182 = vmatprep.subr.mxu0 0.0
    %183 = vmatpush2.xpose.msra.mxu0 0.0
    %184 = vmatprep.subr.mxu0 0.0
    %185 = vmatpush2.xpose.msra.mxu0 0.0
    %186 = vmatprep.subr.mxu0 0.0
    %187 = vmatpush2.xpose.msra.mxu0 0.0
    %188 = vmatprep.subr.mxu0 0.0
    %189 = vmatpush2.xpose.msra.mxu0 0.0
    %190 = vmatprep.subr.mxu0 0.0
    %191 = vmatpush2.xpose.msra.mxu0 0.0
    %192 = vmatprep.subr.mxu0 0.0
    %193 = vmatpush2.xpose.msra.mxu0 0.0
    %194 = vmatprep.subr.mxu0 0.0
    %195 = vmatpush2.xpose.msra.mxu0 0.0
    %196 = vmatprep.subr.mxu0 0.0
    %197 = vmatpush2.xpose.msra.mxu0 0.0
    %198 = vmatprep.subr.mxu0 0.0
    %199 = vmatpush2.xpose.msra.mxu0 0.0
    %200 = vmatprep.subr.mxu0 0.0
    %201 = vmatpush2.xpose.msra.mxu0 0.0
    %202 = vmatprep.subr.mxu0 0.0
    %203 = vmatpush2.xpose.msra.mxu0 0.0
    %204 = vmatprep.subr.mxu0 0.0
    %205 = vmatpush2.xpose.msra.mxu0 0.0
    %206 = vmatprep.mubr.f32.mxu0 0.0
    %207 = vmatmul.mubr.f32.gmra.mxu0 %v125
    %v208 = vpop.f32.mrf.mxu0
    %v209 = vadd.f32 0.0, %v208
    %v210 = vpop.f32.mrf.mxu0
    %211 = vmatprep.mubr.f32.mxu0 0.0
    %212 = vmatmul.mubr.f32.gmra.mxu0 %v128
    %v213 = vpop.f32.mrf.mxu0
    %v214 = vadd.f32 0.0, %v213
    %v215 = vpop.f32.mrf.mxu0
    %216 = vdwg.mxu0
    %v218 = vsel %vm123, %v109, 0
    %v221 = vsel %vm123, %v110, 0
    %v224 = vsel %vm123, %v79, 0
    %v227 = vsel %vm123, %v80, 0
    %v230 = vsel %vm123, %v81, 0
    %v233 = vsel %vm123, %v82, 0
    %235 = vmatprep.subr.mxu0 0.0
    %236 = vmatpush1.xpose.msra.mxu0 0.0
    %237 = vmatprep.subr.mxu0 0.0
    %238 = vmatpush1.xpose.msra.mxu0 0.0
    %239 = vmatprep.subr.mxu0 0.0
    %240 = vmatpush1.xpose.msra.mxu0 0.0
    %241 = vmatprep.subr.mxu0 0.0
    %242 = vmatpush1.xpose.msra.mxu0 0.0
    %243 = vmatprep.subr.mxu0 0.0
    %244 = vmatpush1.xpose.msra.mxu0 0.0
    %245 = vmatprep.subr.mxu0 0.0
    %246 = vmatpush1.xpose.msra.mxu0 0.0
    %247 = vmatprep.subr.mxu0 0.0
    %248 = vmatpush1.xpose.msra.mxu0 0.0
    %249 = vmatprep.subr.mxu0 0.0
    %250 = vmatpush1.xpose.msra.mxu0 0.0
    %251 = vmatprep.subr.mxu0 0.0
    %252 = vmatpush1.xpose.msra.mxu0 0.0
    %253 = vmatprep.subr.mxu0 0.0
    %254 = vmatpush1.xpose.msra.mxu0 0.0
    %255 = vmatprep.subr.mxu0 0.0
    %256 = vmatpush1.xpose.msra.mxu0 0.0
    %257 = vmatprep.subr.mxu0 0.0
    %258 = vmatpush1.xpose.msra.mxu0 0.0
    %259 = vmatprep.subr.mxu0 0.0
    %260 = vmatpush1.xpose.msra.mxu0 %v233
    %261 = vmatprep.subr.mxu0 0.0
    %262 = vmatpush1.xpose.msra.mxu0 %v230
    %263 = vmatprep.subr.mxu0 0.0
    %264 = vmatpush1.xpose.msra.mxu0 %v227
    %265 = vmatprep.subr.mxu0 0.0
    %266 = vmatpush1.xpose.msra.mxu0 %v224
    %267 = vmatprep.subr.mxu0 0.0
    %268 = vmatpush2.xpose.msra.mxu0 0.0
    %269 = vmatprep.subr.mxu0 0.0
    %270 = vmatpush2.xpose.msra.mxu0 0.0
    %271 = vmatprep.subr.mxu0 0.0
    %272 = vmatpush2.xpose.msra.mxu0 0.0
    %273 = vmatprep.subr.mxu0 0.0
    %274 = vmatpush2.xpose.msra.mxu0 0.0
    %275 = vmatprep.subr.mxu0 0.0
    %276 = vmatpush2.xpose.msra.mxu0 0.0
    %277 = vmatprep.subr.mxu0 0.0
    %278 = vmatpush2.xpose.msra.mxu0 0.0
    %279 = vmatprep.subr.mxu0 0.0
    %280 = vmatpush2.xpose.msra.mxu0 0.0
    %281 = vmatprep.subr.mxu0 0.0
    %282 = vmatpush2.xpose.msra.mxu0 0.0
    %283 = vmatprep.subr.mxu0 0.0
    %284 = vmatpush2.xpose.msra.mxu0 0.0
    %285 = vmatprep.subr.mxu0 0.0
    %286 = vmatpush2.xpose.msra.mxu0 0.0
    %287 = vmatprep.subr.mxu0 0.0
    %288 = vmatpush2.xpose.msra.mxu0 0.0
    %289 = vmatprep.subr.mxu0 0.0
    %290 = vmatpush2.xpose.msra.mxu0 0.0
    %291 = vmatprep.subr.mxu0 0.0
    %292 = vmatpush2.xpose.msra.mxu0 0.0
    %293 = vmatprep.subr.mxu0 0.0
    %294 = vmatpush2.xpose.msra.mxu0 0.0
    %295 = vmatprep.subr.mxu0 0.0
    %296 = vmatpush2.xpose.msra.mxu0 0.0
    %297 = vmatprep.subr.mxu0 0.0
    %298 = vmatpush2.xpose.msra.mxu0 0.0
    %299 = vmatprep.mubr.f32.mxu0 0.0
    %300 = vmatmul.mubr.f32.gmra.mxu0 %v218
    %v301 = vpop.f32.mrf.mxu0
    %v302 = vadd.f32 0.0, %v301
    %v303 = vpop.f32.mrf.mxu0
    %304 = vmatprep.mubr.f32.mxu0 0.0
    %305 = vmatmul.mubr.f32.gmra.mxu0 %v221
    %v306 = vpop.f32.mrf.mxu0
    %v307 = vadd.f32 0.0, %v306
    %v308 = vpop.f32.mrf.mxu0
    %309 = vdwg.mxu0
    %v311 = vsel %vm123, %v111, 0
    %v314 = vsel %vm123, %v112, 0
    %v317 = vsel %vm123, %v83, 0
    %v320 = vsel %vm123, %v84, 0
    %v323 = vsel %vm123, %v85, 0
    %v326 = vsel %vm123, %v86, 0
    %328 = vmatprep.subr.mxu0 0.0
    %329 = vmatpush1.xpose.msra.mxu0 0.0
    %330 = vmatprep.subr.mxu0 0.0
    %331 = vmatpush1.xpose.msra.mxu0 0.0
    %332 = vmatprep.subr.mxu0 0.0
    %333 = vmatpush1.xpose.msra.mxu0 0.0
    %334 = vmatprep.subr.mxu0 0.0
    %335 = vmatpush1.xpose.msra.mxu0 0.0
    %336 = vmatprep.subr.mxu0 0.0
    %337 = vmatpush1.xpose.msra.mxu0 0.0
    %338 = vmatprep.subr.mxu0 0.0
    %339 = vmatpush1.xpose.msra.mxu0 0.0
    %340 = vmatprep.subr.mxu0 0.0
    %341 = vmatpush1.xpose.msra.mxu0 0.0
    %342 = vmatprep.subr.mxu0 0.0
    %343 = vmatpush1.xpose.msra.mxu0 0.0
    %344 = vmatprep.subr.mxu0 0.0
    %345 = vmatpush1.xpose.msra.mxu0 0.0
    %346 = vmatprep.subr.mxu0 0.0
    %347 = vmatpush1.xpose.msra.mxu0 0.0
    %348 = vmatprep.subr.mxu0 0.0
    %349 = vmatpush1.xpose.msra.mxu0 0.0
    %350 = vmatprep.subr.mxu0 0.0
    %351 = vmatpush1.xpose.msra.mxu0 0.0
    %352 = vmatprep.subr.mxu0 0.0
    %353 = vmatpush1.xpose.msra.mxu0 %v326
    %354 = vmatprep.subr.mxu0 0.0
    %355 = vmatpush1.xpose.msra.mxu0 %v323
    %356 = vmatprep.subr.mxu0 0.0
    %357 = vmatpush1.xpose.msra.mxu0 %v320
    %358 = vmatprep.subr.mxu0 0.0
    %359 = vmatpush1.xpose.msra.mxu0 %v317
    %360 = vmatprep.subr.mxu0 0.0
    %361 = vmatpush2.xpose.msra.mxu0 0.0
    %362 = vmatprep.subr.mxu0 0.0
    %363 = vmatpush2.xpose.msra.mxu0 0.0
    %364 = vmatprep.subr.mxu0 0.0
    %365 = vmatpush2.xpose.msra.mxu0 0.0
    %366 = vmatprep.subr.mxu0 0.0
    %367 = vmatpush2.xpose.msra.mxu0 0.0
    %368 = vmatprep.subr.mxu0 0.0
    %369 = vmatpush2.xpose.msra.mxu0 0.0
    %370 = vmatprep.subr.mxu0 0.0
    %371 = vmatpush2.xpose.msra.mxu0 0.0
    %372 = vmatprep.subr.mxu0 0.0
    %373 = vmatpush2.xpose.msra.mxu0 0.0
    %374 = vmatprep.subr.mxu0 0.0
    %375 = vmatpush2.xpose.msra.mxu0 0.0
    %376 = vmatprep.subr.mxu0 0.0
    %377 = vmatpush2.xpose.msra.mxu0 0.0
    %378 = vmatprep.subr.mxu0 0.0
    %379 = vmatpush2.xpose.msra.mxu0 0.0
    %380 = vmatprep.subr.mxu0 0.0
    %381 = vmatpush2.xpose.msra.mxu0 0.0
    %382 = vmatprep.subr.mxu0 0.0
    %383 = vmatpush2.xpose.msra.mxu0 0.0
    %384 = vmatprep.subr.mxu0 0.0
    %385 = vmatpush2.xpose.msra.mxu0 0.0
    %386 = vmatprep.subr.mxu0 0.0
    %387 = vmatpush2.xpose.msra.mxu0 0.0
    %388 = vmatprep.subr.mxu0 0.0
    %389 = vmatpush2.xpose.msra.mxu0 0.0
    %390 = vmatprep.subr.mxu0 0.0
    %391 = vmatpush2.xpose.msra.mxu0 0.0
    %392 = vmatprep.mubr.f32.mxu0 0.0
    %393 = vmatmul.mubr.f32.gmra.mxu0 %v311
    %v394 = vpop.f32.mrf.mxu0
    %v395 = vadd.f32 0.0, %v394
    %v396 = vpop.f32.mrf.mxu0
    %397 = vmatprep.mubr.f32.mxu0 0.0
    %398 = vmatmul.mubr.f32.gmra.mxu0 %v314
    %v399 = vpop.f32.mrf.mxu0
    %v400 = vadd.f32 0.0, %v399
    %v401 = vpop.f32.mrf.mxu0
    %402 = vdwg.mxu0
    %v404 = vsel %vm123, %v113, 0
    %v407 = vsel %vm123, %v114, 0
    %v410 = vsel %vm123, %v87, 0
    %v413 = vsel %vm123, %v88, 0
    %v416 = vsel %vm123, %v89, 0
    %v419 = vsel %vm123, %v90, 0
    %421 = vmatprep.subr.mxu0 0.0
    %422 = vmatpush1.xpose.msra.mxu0 0.0
    %423 = vmatprep.subr.mxu0 0.0
    %424 = vmatpush1.xpose.msra.mxu0 0.0
    %425 = vmatprep.subr.mxu0 0.0
    %426 = vmatpush1.xpose.msra.mxu0 0.0
    %427 = vmatprep.subr.mxu0 0.0
    %428 = vmatpush1.xpose.msra.mxu0 0.0
    %429 = vmatprep.subr.mxu0 0.0
    %430 = vmatpush1.xpose.msra.mxu0 0.0
    %431 = vmatprep.subr.mxu0 0.0
    %432 = vmatpush1.xpose.msra.mxu0 0.0
    %433 = vmatprep.subr.mxu0 0.0
    %434 = vmatpush1.xpose.msra.mxu0 0.0
    %435 = vmatprep.subr.mxu0 0.0
    %436 = vmatpush1.xpose.msra.mxu0 0.0
    %437 = vmatprep.subr.mxu0 0.0
    %438 = vmatpush1.xpose.msra.mxu0 0.0
    %439 = vmatprep.subr.mxu0 0.0
    %440 = vmatpush1.xpose.msra.mxu0 0.0
    %441 = vmatprep.subr.mxu0 0.0
    %442 = vmatpush1.xpose.msra.mxu0 0.0
    %443 = vmatprep.subr.mxu0 0.0
    %444 = vmatpush1.xpose.msra.mxu0 0.0
    %445 = vmatprep.subr.mxu0 0.0
    %446 = vmatpush1.xpose.msra.mxu0 %v419
    %447 = vmatprep.subr.mxu0 0.0
    %448 = vmatpush1.xpose.msra.mxu0 %v416
    %449 = vmatprep.subr.mxu0 0.0
    %450 = vmatpush1.xpose.msra.mxu0 %v413
    %451 = vmatprep.subr.mxu0 0.0
    %452 = vmatpush1.xpose.msra.mxu0 %v410
    %453 = vmatprep.subr.mxu0 0.0
    %454 = vmatpush2.xpose.msra.mxu0 0.0
    %455 = vmatprep.subr.mxu0 0.0
    %456 = vmatpush2.xpose.msra.mxu0 0.0
    %457 = vmatprep.subr.mxu0 0.0
    %458 = vmatpush2.xpose.msra.mxu0 0.0
    %459 = vmatprep.subr.mxu0 0.0
    %460 = vmatpush2.xpose.msra.mxu0 0.0
    %461 = vmatprep.subr.mxu0 0.0
    %462 = vmatpush2.xpose.msra.mxu0 0.0
    %463 = vmatprep.subr.mxu0 0.0
    %464 = vmatpush2.xpose.msra.mxu0 0.0
    %465 = vmatprep.subr.mxu0 0.0
    %466 = vmatpush2.xpose.msra.mxu0 0.0
    %467 = vmatprep.subr.mxu0 0.0
    %468 = vmatpush2.xpose.msra.mxu0 0.0
    %469 = vmatprep.subr.mxu0 0.0
    %470 = vmatpush2.xpose.msra.mxu0 0.0
    %471 = vmatprep.subr.mxu0 0.0
    %472 = vmatpush2.xpose.msra.mxu0 0.0
    %473 = vmatprep.subr.mxu0 0.0
    %474 = vmatpush2.xpose.msra.mxu0 0.0
    %475 = vmatprep.subr.mxu0 0.0
    %476 = vmatpush2.xpose.msra.mxu0 0.0
    %477 = vmatprep.subr.mxu0 0.0
    %478 = vmatpush2.xpose.msra.mxu0 0.0
    %479 = vmatprep.subr.mxu0 0.0
    %480 = vmatpush2.xpose.msra.mxu0 0.0
    %481 = vmatprep.subr.mxu0 0.0
    %482 = vmatpush2.xpose.msra.mxu0 0.0
    %483 = vmatprep.subr.mxu0 0.0
    %484 = vmatpush2.xpose.msra.mxu0 0.0
    %485 = vmatprep.mubr.f32.mxu0 0.0
    %486 = vmatmul.mubr.f32.gmra.mxu0 %v404
    %v487 = vpop.f32.mrf.mxu0
    %v488 = vadd.f32 0.0, %v487
    %v489 = vpop.f32.mrf.mxu0
    %490 = vmatprep.mubr.f32.mxu0 0.0
    %491 = vmatmul.mubr.f32.gmra.mxu0 %v407
    %v492 = vpop.f32.mrf.mxu0
    %v493 = vadd.f32 0.0, %v492
    %v494 = vpop.f32.mrf.mxu0
    %495 = vdwg.mxu0
    %v497 = vsel %vm123, %v115, 0
    %v500 = vsel %vm123, %v116, 0
    %v503 = vsel %vm123, %v91, 0
    %v506 = vsel %vm123, %v92, 0
    %v509 = vsel %vm123, %v93, 0
    %v512 = vsel %vm123, %v94, 0
    %514 = vmatprep.subr.mxu0 0.0
    %515 = vmatpush1.xpose.msra.mxu0 0.0
    %516 = vmatprep.subr.mxu0 0.0
    %517 = vmatpush1.xpose.msra.mxu0 0.0
    %518 = vmatprep.subr.mxu0 0.0
    %519 = vmatpush1.xpose.msra.mxu0 0.0
    %520 = vmatprep.subr.mxu0 0.0
    %521 = vmatpush1.xpose.msra.mxu0 0.0
    %522 = vmatprep.subr.mxu0 0.0
    %523 = vmatpush1.xpose.msra.mxu0 0.0
    %524 = vmatprep.subr.mxu0 0.0
    %525 = vmatpush1.xpose.msra.mxu0 0.0
    %526 = vmatprep.subr.mxu0 0.0
    %527 = vmatpush1.xpose.msra.mxu0 0.0
    %528 = vmatprep.subr.mxu0 0.0
    %529 = vmatpush1.xpose.msra.mxu0 0.0
    %530 = vmatprep.subr.mxu0 0.0
    %531 = vmatpush1.xpose.msra.mxu0 0.0
    %532 = vmatprep.subr.mxu0 0.0
    %533 = vmatpush1.xpose.msra.mxu0 0.0
    %534 = vmatprep.subr.mxu0 0.0
    %535 = vmatpush1.xpose.msra.mxu0 0.0
    %536 = vmatprep.subr.mxu0 0.0
    %537 = vmatpush1.xpose.msra.mxu0 0.0
    %538 = vmatprep.subr.mxu0 0.0
    %539 = vmatpush1.xpose.msra.mxu0 %v512
    %540 = vmatprep.subr.mxu0 0.0
    %541 = vmatpush1.xpose.msra.mxu0 %v509
    %542 = vmatprep.subr.mxu0 0.0
    %543 = vmatpush1.xpose.msra.mxu0 %v506
    %544 = vmatprep.subr.mxu0 0.0
    %545 = vmatpush1.xpose.msra.mxu0 %v503
    %546 = vmatprep.subr.mxu0 0.0
    %547 = vmatpush2.xpose.msra.mxu0 0.0
    %548 = vmatprep.subr.mxu0 0.0
    %549 = vmatpush2.xpose.msra.mxu0 0.0
    %550 = vmatprep.subr.mxu0 0.0
    %551 = vmatpush2.xpose.msra.mxu0 0.0
    %552 = vmatprep.subr.mxu0 0.0
    %553 = vmatpush2.xpose.msra.mxu0 0.0
    %554 = vmatprep.subr.mxu0 0.0
    %555 = vmatpush2.xpose.msra.mxu0 0.0
    %556 = vmatprep.subr.mxu0 0.0
    %557 = vmatpush2.xpose.msra.mxu0 0.0
    %558 = vmatprep.subr.mxu0 0.0
    %559 = vmatpush2.xpose.msra.mxu0 0.0
    %560 = vmatprep.subr.mxu0 0.0
    %561 = vmatpush2.xpose.msra.mxu0 0.0
    %562 = vmatprep.subr.mxu0 0.0
    %563 = vmatpush2.xpose.msra.mxu0 0.0
    %564 = vmatprep.subr.mxu0 0.0
    %565 = vmatpush2.xpose.msra.mxu0 0.0
    %566 = vmatprep.subr.mxu0 0.0
    %567 = vmatpush2.xpose.msra.mxu0 0.0
    %568 = vmatprep.subr.mxu0 0.0
    %569 = vmatpush2.xpose.msra.mxu0 0.0
    %570 = vmatprep.subr.mxu0 0.0
    %571 = vmatpush2.xpose.msra.mxu0 0.0
    %572 = vmatprep.subr.mxu0 0.0
    %573 = vmatpush2.xpose.msra.mxu0 0.0
    %574 = vmatprep.subr.mxu0 0.0
    %575 = vmatpush2.xpose.msra.mxu0 0.0
    %576 = vmatprep.subr.mxu0 0.0
    %577 = vmatpush2.xpose.msra.mxu0 0.0
    %578 = vmatprep.mubr.f32.mxu0 0.0
    %579 = vmatmul.mubr.f32.gmra.mxu0 %v497
    %v580 = vpop.f32.mrf.mxu0
    %v581 = vadd.f32 0.0, %v580
    %v582 = vpop.f32.mrf.mxu0
    %583 = vmatprep.mubr.f32.mxu0 0.0
    %584 = vmatmul.mubr.f32.gmra.mxu0 %v500
    %v585 = vpop.f32.mrf.mxu0
    %v586 = vadd.f32 0.0, %v585
    %v587 = vpop.f32.mrf.mxu0
    %588 = vdwg.mxu0
    %v590 = vsel %vm123, %v117, 0
    %v593 = vsel %vm123, %v118, 0
    %v596 = vsel %vm123, %v95, 0
    %v599 = vsel %vm123, %v96, 0
    %v602 = vsel %vm123, %v97, 0
    %v605 = vsel %vm123, %v98, 0
    %607 = vmatprep.subr.mxu0 0.0
    %608 = vmatpush1.xpose.msra.mxu0 0.0
    %609 = vmatprep.subr.mxu0 0.0
    %610 = vmatpush1.xpose.msra.mxu0 0.0
    %611 = vmatprep.subr.mxu0 0.0
    %612 = vmatpush1.xpose.msra.mxu0 0.0
    %613 = vmatprep.subr.mxu0 0.0
    %614 = vmatpush1.xpose.msra.mxu0 0.0
    %615 = vmatprep.subr.mxu0 0.0
    %616 = vmatpush1.xpose.msra.mxu0 0.0
    %617 = vmatprep.subr.mxu0 0.0
    %618 = vmatpush1.xpose.msra.mxu0 0.0
    %619 = vmatprep.subr.mxu0 0.0
    %620 = vmatpush1.xpose.msra.mxu0 0.0
    %621 = vmatprep.subr.mxu0 0.0
    %622 = vmatpush1.xpose.msra.mxu0 0.0
    %623 = vmatprep.subr.mxu0 0.0
    %624 = vmatpush1.xpose.msra.mxu0 0.0
    %625 = vmatprep.subr.mxu0 0.0
    %626 = vmatpush1.xpose.msra.mxu0 0.0
    %627 = vmatprep.subr.mxu0 0.0
    %628 = vmatpush1.xpose.msra.mxu0 0.0
    %629 = vmatprep.subr.mxu0 0.0
    %630 = vmatpush1.xpose.msra.mxu0 0.0
    %631 = vmatprep.subr.mxu0 0.0
    %632 = vmatpush1.xpose.msra.mxu0 %v605
    %633 = vmatprep.subr.mxu0 0.0
    %634 = vmatpush1.xpose.msra.mxu0 %v602
    %635 = vmatprep.subr.mxu0 0.0
    %636 = vmatpush1.xpose.msra.mxu0 %v599
    %637 = vmatprep.subr.mxu0 0.0
    %638 = vmatpush1.xpose.msra.mxu0 %v596
    %639 = vmatprep.subr.mxu0 0.0
    %640 = vmatpush2.xpose.msra.mxu0 0.0
    %641 = vmatprep.subr.mxu0 0.0
    %642 = vmatpush2.xpose.msra.mxu0 0.0
    %643 = vmatprep.subr.mxu0 0.0
    %644 = vmatpush2.xpose.msra.mxu0 0.0
    %645 = vmatprep.subr.mxu0 0.0
    %646 = vmatpush2.xpose.msra.mxu0 0.0
    %647 = vmatprep.subr.mxu0 0.0
    %648 = vmatpush2.xpose.msra.mxu0 0.0
    %649 = vmatprep.subr.mxu0 0.0
    %650 = vmatpush2.xpose.msra.mxu0 0.0
    %651 = vmatprep.subr.mxu0 0.0
    %652 = vmatpush2.xpose.msra.mxu0 0.0
    %653 = vmatprep.subr.mxu0 0.0
    %654 = vmatpush2.xpose.msra.mxu0 0.0
    %655 = vmatprep.subr.mxu0 0.0
    %656 = vmatpush2.xpose.msra.mxu0 0.0
    %657 = vmatprep.subr.mxu0 0.0
    %658 = vmatpush2.xpose.msra.mxu0 0.0
    %659 = vmatprep.subr.mxu0 0.0
    %660 = vmatpush2.xpose.msra.mxu0 0.0
    %661 = vmatprep.subr.mxu0 0.0
    %662 = vmatpush2.xpose.msra.mxu0 0.0
    %663 = vmatprep.subr.mxu0 0.0
    %664 = vmatpush2.xpose.msra.mxu0 0.0
    %665 = vmatprep.subr.mxu0 0.0
    %666 = vmatpush2.xpose.msra.mxu0 0.0
    %667 = vmatprep.subr.mxu0 0.0
    %668 = vmatpush2.xpose.msra.mxu0 0.0
    %669 = vmatprep.subr.mxu0 0.0
    %670 = vmatpush2.xpose.msra.mxu0 0.0
    %671 = vmatprep.mubr.f32.mxu0 0.0
    %672 = vmatmul.mubr.f32.gmra.mxu0 %v590
    %v673 = vpop.f32.mrf.mxu0
    %v674 = vadd.f32 0.0, %v673
    %v675 = vpop.f32.mrf.mxu0
    %676 = vmatprep.mubr.f32.mxu0 0.0
    %677 = vmatmul.mubr.f32.gmra.mxu0 %v593
    %v678 = vpop.f32.mrf.mxu0
    %v679 = vadd.f32 0.0, %v678
    %v680 = vpop.f32.mrf.mxu0
    %681 = vdwg.mxu0
    %v683 = vsel %vm123, %v119, 0
    %v686 = vsel %vm123, %v120, 0
    %v689 = vsel %vm123, %v99, 0
    %v692 = vsel %vm123, %v100, 0
    %v695 = vsel %vm123, %v101, 0
    %v698 = vsel %vm123, %v102, 0
    %700 = vmatprep.subr.mxu0 0.0
    %701 = vmatpush1.xpose.msra.mxu0 0.0
    %702 = vmatprep.subr.mxu0 0.0
    %703 = vmatpush1.xpose.msra.mxu0 0.0
    %704 = vmatprep.subr.mxu0 0.0
    %705 = vmatpush1.xpose.msra.mxu0 0.0
    %706 = vmatprep.subr.mxu0 0.0
    %707 = vmatpush1.xpose.msra.mxu0 0.0
    %708 = vmatprep.subr.mxu0 0.0
    %709 = vmatpush1.xpose.msra.mxu0 0.0
    %710 = vmatprep.subr.mxu0 0.0
    %711 = vmatpush1.xpose.msra.mxu0 0.0
    %712 = vmatprep.subr.mxu0 0.0
    %713 = vmatpush1.xpose.msra.mxu0 0.0
    %714 = vmatprep.subr.mxu0 0.0
    %715 = vmatpush1.xpose.msra.mxu0 0.0
    %716 = vmatprep.subr.mxu0 0.0
    %717 = vmatpush1.xpose.msra.mxu0 0.0
    %718 = vmatprep.subr.mxu0 0.0
    %719 = vmatpush1.xpose.msra.mxu0 0.0
    %720 = vmatprep.subr.mxu0 0.0
    %721 = vmatpush1.xpose.msra.mxu0 0.0
    %722 = vmatprep.subr.mxu0 0.0
    %723 = vmatpush1.xpose.msra.mxu0 0.0
    %724 = vmatprep.subr.mxu0 0.0
    %725 = vmatpush1.xpose.msra.mxu0 %v698
    %726 = vmatprep.subr.mxu0 0.0
    %727 = vmatpush1.xpose.msra.mxu0 %v695
    %728 = vmatprep.subr.mxu0 0.0
    %729 = vmatpush1.xpose.msra.mxu0 %v692
    %730 = vmatprep.subr.mxu0 0.0
    %731 = vmatpush1.xpose.msra.mxu0 %v689
    %732 = vmatprep.subr.mxu0 0.0
    %733 = vmatpush2.xpose.msra.mxu0 0.0
    %734 = vmatprep.subr.mxu0 0.0
    %735 = vmatpush2.xpose.msra.mxu0 0.0
    %736 = vmatprep.subr.mxu0 0.0
    %737 = vmatpush2.xpose.msra.mxu0 0.0
    %738 = vmatprep.subr.mxu0 0.0
    %739 = vmatpush2.xpose.msra.mxu0 0.0
    %740 = vmatprep.subr.mxu0 0.0
    %741 = vmatpush2.xpose.msra.mxu0 0.0
    %742 = vmatprep.subr.mxu0 0.0
    %743 = vmatpush2.xpose.msra.mxu0 0.0
    %744 = vmatprep.subr.mxu0 0.0
    %745 = vmatpush2.xpose.msra.mxu0 0.0
    %746 = vmatprep.subr.mxu0 0.0
    %747 = vmatpush2.xpose.msra.mxu0 0.0
    %748 = vmatprep.subr.mxu0 0.0
    %749 = vmatpush2.xpose.msra.mxu0 0.0
    %750 = vmatprep.subr.mxu0 0.0
    %751 = vmatpush2.xpose.msra.mxu0 0.0
    %752 = vmatprep.subr.mxu0 0.0
    %753 = vmatpush2.xpose.msra.mxu0 0.0
    %754 = vmatprep.subr.mxu0 0.0
    %755 = vmatpush2.xpose.msra.mxu0 0.0
    %756 = vmatprep.subr.mxu0 0.0
    %757 = vmatpush2.xpose.msra.mxu0 0.0
    %758 = vmatprep.subr.mxu0 0.0
    %759 = vmatpush2.xpose.msra.mxu0 0.0
    %760 = vmatprep.subr.mxu0 0.0
    %761 = vmatpush2.xpose.msra.mxu0 0.0
    %762 = vmatprep.subr.mxu0 0.0
    %763 = vmatpush2.xpose.msra.mxu0 0.0
    %764 = vmatprep.mubr.f32.mxu0 0.0
    %765 = vmatmul.mubr.f32.gmra.mxu0 %v683
    %v766 = vpop.f32.mrf.mxu0
    %v767 = vadd.f32 0.0, %v766
    %v768 = vpop.f32.mrf.mxu0
    %769 = vmatprep.mubr.f32.mxu0 0.0
    %770 = vmatmul.mubr.f32.gmra.mxu0 %v686
    %v771 = vpop.f32.mrf.mxu0
    %v772 = vadd.f32 0.0, %v771
    %v773 = vpop.f32.mrf.mxu0
    %774 = vdwg.mxu0
    %v776 = vsel %vm123, %v121, 0
    %v779 = vsel %vm123, %v122, 0
    %v782 = vsel %vm123, %v103, 0
    %v785 = vsel %vm123, %v104, 0
    %v788 = vsel %vm123, %v105, 0
    %v791 = vsel %vm123, %v106, 0
    %793 = vmatprep.subr.mxu0 0.0
    %794 = vmatpush1.xpose.msra.mxu0 0.0
    %795 = vmatprep.subr.mxu0 0.0
    %796 = vmatpush1.xpose.msra.mxu0 0.0
    %797 = vmatprep.subr.mxu0 0.0
    %798 = vmatpush1.xpose.msra.mxu0 0.0
    %799 = vmatprep.subr.mxu0 0.0
    %800 = vmatpush1.xpose.msra.mxu0 0.0
    %801 = vmatprep.subr.mxu0 0.0
    %802 = vmatpush1.xpose.msra.mxu0 0.0
    %803 = vmatprep.subr.mxu0 0.0
    %804 = vmatpush1.xpose.msra.mxu0 0.0
    %805 = vmatprep.subr.mxu0 0.0
    %806 = vmatpush1.xpose.msra.mxu0 0.0
    %807 = vmatprep.subr.mxu0 0.0
    %808 = vmatpush1.xpose.msra.mxu0 0.0
    %809 = vmatprep.subr.mxu0 0.0
    %810 = vmatpush1.xpose.msra.mxu0 0.0
    %811 = vmatprep.subr.mxu0 0.0
    %812 = vmatpush1.xpose.msra.mxu0 0.0
    %813 = vmatprep.subr.mxu0 0.0
    %814 = vmatpush1.xpose.msra.mxu0 0.0
    %815 = vmatprep.subr.mxu0 0.0
    %816 = vmatpush1.xpose.msra.mxu0 0.0
    %817 = vmatprep.subr.mxu0 0.0
    %818 = vmatpush1.xpose.msra.mxu0 %v791
    %819 = vmatprep.subr.mxu0 0.0
    %820 = vmatpush1.xpose.msra.mxu0 %v788
    %821 = vmatprep.subr.mxu0 0.0
    %822 = vmatpush1.xpose.msra.mxu0 %v785
    %823 = vmatprep.subr.mxu0 0.0
    %824 = vmatpush1.xpose.msra.mxu0 %v782
    %825 = vmatprep.subr.mxu0 0.0
    %826 = vmatpush2.xpose.msra.mxu0 0.0
    %827 = vmatprep.subr.mxu0 0.0
    %828 = vmatpush2.xpose.msra.mxu0 0.0
    %829 = vmatprep.subr.mxu0 0.0
    %830 = vmatpush2.xpose.msra.mxu0 0.0
    %831 = vmatprep.subr.mxu0 0.0
    %832 = vmatpush2.xpose.msra.mxu0 0.0
    %833 = vmatprep.subr.mxu0 0.0
    %834 = vmatpush2.xpose.msra.mxu0 0.0
    %835 = vmatprep.subr.mxu0 0.0
    %836 = vmatpush2.xpose.msra.mxu0 0.0
    %837 = vmatprep.subr.mxu0 0.0
    %838 = vmatpush2.xpose.msra.mxu0 0.0
    %839 = vmatprep.subr.mxu0 0.0
    %840 = vmatpush2.xpose.msra.mxu0 0.0
    %841 = vmatprep.subr.mxu0 0.0
    %842 = vmatpush2.xpose.msra.mxu0 0.0
    %843 = vmatprep.subr.mxu0 0.0
    %844 = vmatpush2.xpose.msra.mxu0 0.0
    %845 = vmatprep.subr.mxu0 0.0
    %846 = vmatpush2.xpose.msra.mxu0 0.0
    %847 = vmatprep.subr.mxu0 0.0
    %848 = vmatpush2.xpose.msra.mxu0 0.0
    %849 = vmatprep.subr.mxu0 0.0
    %850 = vmatpush2.xpose.msra.mxu0 0.0
    %851 = vmatprep.subr.mxu0 0.0
    %852 = vmatpush2.xpose.msra.mxu0 0.0
    %853 = vmatprep.subr.mxu0 0.0
    %854 = vmatpush2.xpose.msra.mxu0 0.0
    %855 = vmatprep.subr.mxu0 0.0
    %856 = vmatpush2.xpose.msra.mxu0 0.0
    %857 = vmatprep.mubr.f32.mxu0 0.0
    %858 = vmatmul.mubr.f32.gmra.mxu0 %v776
    %v859 = vpop.f32.mrf.mxu0
    %v860 = vadd.f32 0.0, %v859
    %v861 = vpop.f32.mrf.mxu0
    %862 = vmatprep.mubr.f32.mxu0 0.0
    %863 = vmatmul.mubr.f32.gmra.mxu0 %v779
    %v864 = vpop.f32.mrf.mxu0
    %v865 = vadd.f32 0.0, %v864
    %v866 = vpop.f32.mrf.mxu0
    %867 = vdwg.mxu0
    %v868 = vsel %vm123, %v209, -inf
    %869 = vmax.xlane.f32.xlu0 %v868
    %v870 = vpop.xlane.xlu0 %869
    %v871 = vsel %vm123, %v214, -inf
    %872 = vmax.xlane.f32.xlu0 %v871
    %v873 = vpop.xlane.xlu0 %872
    %v874 = vsel %vm123, %v302, -inf
    %875 = vmax.xlane.f32.xlu0 %v874
    %v876 = vpop.xlane.xlu0 %875
    %v877 = vsel %vm123, %v307, -inf
    %878 = vmax.xlane.f32.xlu0 %v877
    %v879 = vpop.xlane.xlu0 %878
    %v880 = vsel %vm123, %v395, -inf
    %881 = vmax.xlane.f32.xlu0 %v880
    %v882 = vpop.xlane.xlu0 %881
    %v883 = vsel %vm123, %v400, -inf
    %884 = vmax.xlane.f32.xlu0 %v883
    %v885 = vpop.xlane.xlu0 %884
    %v886 = vsel %vm123, %v488, -inf
    %887 = vmax.xlane.f32.xlu0 %v886
    %v888 = vpop.xlane.xlu0 %887
    %v889 = vsel %vm123, %v493, -inf
    %890 = vmax.xlane.f32.xlu0 %v889
    %v891 = vpop.xlane.xlu0 %890
    %v892 = vsel %vm123, %v581, -inf
    %893 = vmax.xlane.f32.xlu0 %v892
    %v894 = vpop.xlane.xlu0 %893
    %v895 = vsel %vm123, %v586, -inf
    %896 = vmax.xlane.f32.xlu0 %v895
    %v897 = vpop.xlane.xlu0 %896
    %v898 = vsel %vm123, %v674, -inf
    %899 = vmax.xlane.f32.xlu0 %v898
    %v900 = vpop.xlane.xlu0 %899
    %v901 = vsel %vm123, %v679, -inf
    %902 = vmax.xlane.f32.xlu0 %v901
    %v903 = vpop.xlane.xlu0 %902
    %v904 = vsel %vm123, %v767, -inf
    %905 = vmax.xlane.f32.xlu0 %v904
    %v906 = vpop.xlane.xlu0 %905
    %v907 = vsel %vm123, %v772, -inf
    %908 = vmax.xlane.f32.xlu0 %v907
    %v909 = vpop.xlane.xlu0 %908
    %v910 = vsel %vm123, %v860, -inf
    %911 = vmax.xlane.f32.xlu0 %v910
    %v912 = vpop.xlane.xlu0 %911
    %v913 = vsel %vm123, %v865, -inf
    %914 = vmax.xlane.f32.xlu0 %v913
    %v915 = vpop.xlane.xlu0 %914
    %v916 = vsub.f32 %v209, %v870
    %v917 = vsub.f32 %v214, %v873
    %v918 = vsub.f32 %v302, %v876
    %v919 = vsub.f32 %v307, %v879
    %v920 = vsub.f32 %v395, %v882
    %v921 = vsub.f32 %v400, %v885
    %v922 = vsub.f32 %v488, %v888
    %v923 = vsub.f32 %v493, %v891
    %v924 = vsub.f32 %v581, %v894
    %v925 = vsub.f32 %v586, %v897
    %v926 = vsub.f32 %v674, %v900
    %v927 = vsub.f32 %v679, %v903
    %v928 = vsub.f32 %v767, %v906
    %v929 = vsub.f32 %v772, %v909
    %v930 = vsub.f32 %v860, %v912
    %v931 = vsub.f32 %v865, %v915
    %v932 = vmul.f32 %v916, 1.442695
    %v933 = vpow.pop %v932
    %v934 = vmul.f32 %v917, 1.442695
    %v935 = vpow.pop %v934
    %v936 = vmul.f32 %v918, 1.442695
    %v937 = vpow.pop %v936
    %v938 = vmul.f32 %v919, 1.442695
    %v939 = vpow.pop %v938
    %v940 = vmul.f32 %v920, 1.442695
    %v941 = vpow.pop %v940
    %v942 = vmul.f32 %v921, 1.442695
    %v943 = vpow.pop %v942
    %v944 = vmul.f32 %v922, 1.442695
    %v945 = vpow.pop %v944
    %v946 = vmul.f32 %v923, 1.442695
    %v947 = vpow.pop %v946
    %v948 = vmul.f32 %v924, 1.442695
    %v949 = vpow.pop %v948
    %v950 = vmul.f32 %v925, 1.442695
    %v951 = vpow.pop %v950
    %v952 = vmul.f32 %v926, 1.442695
    %v953 = vpow.pop %v952
    %v954 = vmul.f32 %v927, 1.442695
    %v955 = vpow.pop %v954
    %v956 = vmul.f32 %v928, 1.442695
    %v957 = vpow.pop %v956
    %v958 = vmul.f32 %v929, 1.442695
    %v959 = vpow.pop %v958
    %v960 = vmul.f32 %v930, 1.442695
    %v961 = vpow.pop %v960
    %v962 = vmul.f32 %v931, 1.442695
    %v963 = vpow.pop %v962
    %v964 = vsel %vm123, %v933, 0.0
    %965 = vadd.xlane.f32.xlu0 %v964
    %v966 = vpop.xlane.xlu0 %965
    %v967 = vsel %vm123, %v935, 0.0
    %968 = vadd.xlane.f32.xlu0 %v967
    %v969 = vpop.xlane.xlu0 %968
    %v970 = vsel %vm123, %v937, 0.0
    %971 = vadd.xlane.f32.xlu0 %v970
    %v972 = vpop.xlane.xlu0 %971
    %v973 = vsel %vm123, %v939, 0.0
    %974 = vadd.xlane.f32.xlu0 %v973
    %v975 = vpop.xlane.xlu0 %974
    %v976 = vsel %vm123, %v941, 0.0
    %977 = vadd.xlane.f32.xlu0 %v976
    %v978 = vpop.xlane.xlu0 %977
    %v979 = vsel %vm123, %v943, 0.0
    %980 = vadd.xlane.f32.xlu0 %v979
    %v981 = vpop.xlane.xlu0 %980
    %v982 = vsel %vm123, %v945, 0.0
    %983 = vadd.xlane.f32.xlu0 %v982
    %v984 = vpop.xlane.xlu0 %983
    %v985 = vsel %vm123, %v947, 0.0
    %986 = vadd.xlane.f32.xlu0 %v985
    %v987 = vpop.xlane.xlu0 %986
    %v988 = vsel %vm123, %v949, 0.0
    %989 = vadd.xlane.f32.xlu0 %v988
    %v990 = vpop.xlane.xlu0 %989
    %v991 = vsel %vm123, %v951, 0.0
    %992 = vadd.xlane.f32.xlu0 %v991
    %v993 = vpop.xlane.xlu0 %992
    %v994 = vsel %vm123, %v953, 0.0
    %995 = vadd.xlane.f32.xlu0 %v994
    %v996 = vpop.xlane.xlu0 %995
    %v997 = vsel %vm123, %v955, 0.0
    %998 = vadd.xlane.f32.xlu0 %v997
    %v999 = vpop.xlane.xlu0 %998
    %v1000 = vsel %vm123, %v957, 0.0
    %1001 = vadd.xlane.f32.xlu0 %v1000
    %v1002 = vpop.xlane.xlu0 %1001
    %v1003 = vsel %vm123, %v959, 0.0
    %1004 = vadd.xlane.f32.xlu0 %v1003
    %v1005 = vpop.xlane.xlu0 %1004
    %v1006 = vsel %vm123, %v961, 0.0
    %1007 = vadd.xlane.f32.xlu0 %v1006
    %v1008 = vpop.xlane.xlu0 %1007
    %v1009 = vsel %vm123, %v963, 0.0
    %1010 = vadd.xlane.f32.xlu0 %v1009
    %v1011 = vpop.xlane.xlu0 %1010
    %v1012 = vrcp.pop %v966
    %v1013 = vrcp.pop %v969
    %v1014 = vrcp.pop %v972
    %v1015 = vrcp.pop %v975
    %v1016 = vrcp.pop %v978
    %v1017 = vrcp.pop %v981
    %v1018 = vrcp.pop %v984
    %v1019 = vrcp.pop %v987
    %v1020 = vrcp.pop %v990
    %v1021 = vrcp.pop %v993
    %v1022 = vrcp.pop %v996
    %v1023 = vrcp.pop %v999
    %v1024 = vrcp.pop %v1002
    %v1025 = vrcp.pop %v1005
    %v1026 = vrcp.pop %v1008
    %v1027 = vrcp.pop %v1011
    %v1028 = vmul.f32 %v966, %v1012
    %v1029 = vmul.f32 %v969, %v1013
    %v1030 = vmul.f32 %v972, %v1014
    %v1031 = vmul.f32 %v975, %v1015
    %v1032 = vmul.f32 %v978, %v1016
    %v1033 = vmul.f32 %v981, %v1017
    %v1034 = vmul.f32 %v984, %v1018
    %v1035 = vmul.f32 %v987, %v1019
    %v1036 = vmul.f32 %v990, %v1020
    %v1037 = vmul.f32 %v993, %v1021
    %v1038 = vmul.f32 %v996, %v1022
    %v1039 = vmul.f32 %v999, %v1023
    %v1040 = vmul.f32 %v1002, %v1024
    %v1041 = vmul.f32 %v1005, %v1025
    %v1042 = vmul.f32 %v1008, %v1026
    %v1043 = vmul.f32 %v1011, %v1027
    %v1044 = vsub.f32 2.0, %v1028
    %v1045 = vsub.f32 2.0, %v1029
    %v1046 = vsub.f32 2.0, %v1030
    %v1047 = vsub.f32 2.0, %v1031
    %v1048 = vsub.f32 2.0, %v1032
    %v1049 = vsub.f32 2.0, %v1033
    %v1050 = vsub.f32 2.0, %v1034
    %v1051 = vsub.f32 2.0, %v1035
    %v1052 = vsub.f32 2.0, %v1036
    %v1053 = vsub.f32 2.0, %v1037
    %v1054 = vsub.f32 2.0, %v1038
    %v1055 = vsub.f32 2.0, %v1039
    %v1056 = vsub.f32 2.0, %v1040
    %v1057 = vsub.f32 2.0, %v1041
    %v1058 = vsub.f32 2.0, %v1042
    %v1059 = vsub.f32 2.0, %v1043
    %v1060 = vmul.f32 %v1012, %v1044
    %v1061 = vmul.f32 %v1013, %v1045
    %v1062 = vmul.f32 %v1014, %v1046
    %v1063 = vmul.f32 %v1015, %v1047
    %v1064 = vmul.f32 %v1016, %v1048
    %v1065 = vmul.f32 %v1017, %v1049
    %v1066 = vmul.f32 %v1018, %v1050
    %v1067 = vmul.f32 %v1019, %v1051
    %v1068 = vmul.f32 %v1020, %v1052
    %v1069 = vmul.f32 %v1021, %v1053
    %v1070 = vmul.f32 %v1022, %v1054
    %v1071 = vmul.f32 %v1023, %v1055
    %v1072 = vmul.f32 %v1024, %v1056
    %v1073 = vmul.f32 %v1025, %v1057
    %v1074 = vmul.f32 %v1026, %v1058
    %v1075 = vmul.f32 %v1027, %v1059
    %v1076 = vmul.f32 %v933, %v1060
    %v1077 = vmul.f32 %v935, %v1061
    %v1078 = vmul.f32 %v937, %v1062
    %v1079 = vmul.f32 %v939, %v1063
    %v1080 = vmul.f32 %v941, %v1064
    %v1081 = vmul.f32 %v943, %v1065
    %v1082 = vmul.f32 %v945, %v1066
    %v1083 = vmul.f32 %v947, %v1067
    %v1084 = vmul.f32 %v949, %v1068
    %v1085 = vmul.f32 %v951, %v1069
    %v1086 = vmul.f32 %v953, %v1070
    %v1087 = vmul.f32 %v955, %v1071
    %v1088 = vmul.f32 %v957, %v1072
    %v1089 = vmul.f32 %v959, %v1073
    %v1090 = vmul.f32 %v961, %v1074
    %v1091 = vmul.f32 %v963, %v1075
    %1092 = vst.msk [vmem:[#allocation9] sm:$0xff] %vm123, %v1076
    %1093 = vst.msk [vmem:[#allocation9 + $0x8] sm:$0xff] %vm123, %v1077
    %1094 = vst.msk [vmem:[#allocation9 + $0x10] sm:$0xff] %vm123, %v1078
    %1095 = vst.msk [vmem:[#allocation9 + $0x18] sm:$0xff] %vm123, %v1079
    %1096 = vst.msk [vmem:[#allocation9 + $0x20] sm:$0xff] %vm123, %v1080
    %1097 = vst.msk [vmem:[#allocation9 + $0x28] sm:$0xff] %vm123, %v1081
    %1098 = vst.msk [vmem:[#allocation9 + $0x30] sm:$0xff] %vm123, %v1082
    %1099 = vst.msk [vmem:[#allocation9 + $0x38] sm:$0xff] %vm123, %v1083
    %1100 = vst.msk [vmem:[#allocation9 + $0x40] sm:$0xff] %vm123, %v1084
    %1101 = vst.msk [vmem:[#allocation9 + $0x48] sm:$0xff] %vm123, %v1085
    %1102 = vst.msk [vmem:[#allocation9 + $0x50] sm:$0xff] %vm123, %v1086
    %1103 = vst.msk [vmem:[#allocation9 + $0x58] sm:$0xff] %vm123, %v1087
    %1104 = vst.msk [vmem:[#allocation9 + $0x60] sm:$0xff] %vm123, %v1088
    %1105 = vst.msk [vmem:[#allocation9 + $0x68] sm:$0xff] %vm123, %v1089
    %1106 = vst.msk [vmem:[#allocation9 + $0x70] sm:$0xff] %vm123, %v1090
    %1107 = vst.msk [vmem:[#allocation9 + $0x78] sm:$0xff] %vm123, %v1091
    %v1108 = vld [vmem:[#allocation7] sm:$0xff]
    %v1109 = vld [vmem:[#allocation7 + $0x8] sm:$0xff]
    %v1110 = vld [vmem:[#allocation7 + $0x10] sm:$0xff]
    %v1111 = vld [vmem:[#allocation7 + $0x18] sm:$0xff]
    %v1112 = vld [vmem:[#allocation7 + $0x20] sm:$0xff]
    %v1113 = vld [vmem:[#allocation7 + $0x28] sm:$0xff]
    %v1114 = vld [vmem:[#allocation7 + $0x30] sm:$0xff]
    %v1115 = vld [vmem:[#allocation7 + $0x38] sm:$0xff]
    %v1116 = vld [vmem:[#allocation7 + $0x40] sm:$0xff]
    %v1117 = vld [vmem:[#allocation7 + $0x48] sm:$0xff]
    %v1118 = vld [vmem:[#allocation7 + $0x50] sm:$0xff]
    %v1119 = vld [vmem:[#allocation7 + $0x58] sm:$0xff]
    %v1120 = vld [vmem:[#allocation7 + $0x60] sm:$0xff]
    %v1121 = vld [vmem:[#allocation7 + $0x68] sm:$0xff]
    %v1122 = vld [vmem:[#allocation7 + $0x70] sm:$0xff]
    %v1123 = vld [vmem:[#allocation7 + $0x78] sm:$0xff]
    %v1124 = vld [vmem:[#allocation7 + $0x80] sm:$0xff]
    %v1125 = vld [vmem:[#allocation7 + $0x88] sm:$0xff]
    %v1126 = vld [vmem:[#allocation7 + $0x90] sm:$0xff]
    %v1127 = vld [vmem:[#allocation7 + $0x98] sm:$0xff]
    %v1128 = vld [vmem:[#allocation7 + $0xa0] sm:$0xff]
    %v1129 = vld [vmem:[#allocation7 + $0xa8] sm:$0xff]
    %v1130 = vld [vmem:[#allocation7 + $0xb0] sm:$0xff]
    %v1131 = vld [vmem:[#allocation7 + $0xb8] sm:$0xff]
    %v1132 = vld [vmem:[#allocation7 + $0xc0] sm:$0xff]
    %v1133 = vld [vmem:[#allocation7 + $0xc8] sm:$0xff]
    %v1134 = vld [vmem:[#allocation7 + $0xd0] sm:$0xff]
    %v1135 = vld [vmem:[#allocation7 + $0xd8] sm:$0xff]
    %v1136 = vld [vmem:[#allocation7 + $0xe0] sm:$0xff]
    %v1137 = vld [vmem:[#allocation7 + $0xe8] sm:$0xff]
    %v1138 = vld [vmem:[#allocation7 + $0xf0] sm:$0xff]
    %v1139 = vld [vmem:[#allocation7 + $0xf8] sm:$0xff]
    %v1141 = vsel %vm123, %v1076, 0
    %v1144 = vsel %vm123, %v1077, 0
    %1146 = vmatprep.subr.mxu0 0.0
    %1147 = vmatpush1.msra.mxu0 0.0
    %1148 = vmatprep.subr.mxu0 0.0
    %1149 = vmatpush1.msra.mxu0 0.0
    %1150 = vmatprep.subr.mxu0 0.0
    %1151 = vmatpush1.msra.mxu0 0.0
    %1152 = vmatprep.subr.mxu0 0.0
    %1153 = vmatpush1.msra.mxu0 0.0
    %1154 = vmatprep.subr.mxu0 0.0
    %1155 = vmatpush1.msra.mxu0 0.0
    %1156 = vmatprep.subr.mxu0 0.0
    %1157 = vmatpush1.msra.mxu0 0.0
    %1158 = vmatprep.subr.mxu0 0.0
    %1159 = vmatpush1.msra.mxu0 0.0
    %1160 = vmatprep.subr.mxu0 0.0
    %1161 = vmatpush1.msra.mxu0 0.0
    %1162 = vmatprep.subr.mxu0 0.0
    %1163 = vmatpush1.msra.mxu0 0.0
    %1164 = vmatprep.subr.mxu0 0.0
    %1165 = vmatpush1.msra.mxu0 0.0
    %1166 = vmatprep.subr.mxu0 0.0
    %1167 = vmatpush1.msra.mxu0 0.0
    %1168 = vmatprep.subr.mxu0 0.0
    %1169 = vmatpush1.msra.mxu0 0.0
    %1170 = vmatprep.subr.mxu0 0.0
    %1171 = vmatpush1.msra.mxu0 %v1111
    %1172 = vmatprep.subr.mxu0 0.0
    %1173 = vmatpush1.msra.mxu0 %v1110
    %1174 = vmatprep.subr.mxu0 0.0
    %1175 = vmatpush1.msra.mxu0 %v1109
    %1176 = vmatprep.subr.mxu0 0.0
    %1177 = vmatpush1.msra.mxu0 %v1108
    %1178 = vmatprep.subr.mxu0 0.0
    %1179 = vmatpush2.msra.mxu0 0.0
    %1180 = vmatprep.subr.mxu0 0.0
    %1181 = vmatpush2.msra.mxu0 0.0
    %1182 = vmatprep.subr.mxu0 0.0
    %1183 = vmatpush2.msra.mxu0 0.0
    %1184 = vmatprep.subr.mxu0 0.0
    %1185 = vmatpush2.msra.mxu0 0.0
    %1186 = vmatprep.subr.mxu0 0.0
    %1187 = vmatpush2.msra.mxu0 0.0
    %1188 = vmatprep.subr.mxu0 0.0
    %1189 = vmatpush2.msra.mxu0 0.0
    %1190 = vmatprep.subr.mxu0 0.0
    %1191 = vmatpush2.msra.mxu0 0.0
    %1192 = vmatprep.subr.mxu0 0.0
    %1193 = vmatpush2.msra.mxu0 0.0
    %1194 = vmatprep.subr.mxu0 0.0
    %1195 = vmatpush2.msra.mxu0 0.0
    %1196 = vmatprep.subr.mxu0 0.0
    %1197 = vmatpush2.msra.mxu0 0.0
    %1198 = vmatprep.subr.mxu0 0.0
    %1199 = vmatpush2.msra.mxu0 0.0
    %1200 = vmatprep.subr.mxu0 0.0
    %1201 = vmatpush2.msra.mxu0 0.0
    %1202 = vmatprep.subr.mxu0 0.0
    %1203 = vmatpush2.msra.mxu0 0.0
    %1204 = vmatprep.subr.mxu0 0.0
    %1205 = vmatpush2.msra.mxu0 0.0
    %1206 = vmatprep.subr.mxu0 0.0
    %1207 = vmatpush2.msra.mxu0 0.0
    %1208 = vmatprep.subr.mxu0 0.0
    %1209 = vmatpush2.msra.mxu0 0.0
    %1210 = vmatprep.mubr.f32.mxu0 0.0
    %1211 = vmatmul.mubr.f32.gmra.mxu0 %v1141
    %v1212 = vpop.f32.mrf.mxu0
    %v1213 = vadd.f32 0.0, %v1212
    %v1214 = vpop.f32.mrf.mxu0
    %1215 = vmatprep.mubr.f32.mxu0 0.0
    %1216 = vmatmul.mubr.f32.gmra.mxu0 %v1144
    %v1217 = vpop.f32.mrf.mxu0
    %v1218 = vadd.f32 0.0, %v1217
    %v1219 = vpop.f32.mrf.mxu0
    %1220 = vdwg.mxu0
    %v1222 = vsel %vm123, %v1078, 0
    %v1225 = vsel %vm123, %v1079, 0
    %1227 = vmatprep.subr.mxu0 0.0
    %1228 = vmatpush1.msra.mxu0 0.0
    %1229 = vmatprep.subr.mxu0 0.0
    %1230 = vmatpush1.msra.mxu0 0.0
    %1231 = vmatprep.subr.mxu0 0.0
    %1232 = vmatpush1.msra.mxu0 0.0
    %1233 = vmatprep.subr.mxu0 0.0
    %1234 = vmatpush1.msra.mxu0 0.0
    %1235 = vmatprep.subr.mxu0 0.0
    %1236 = vmatpush1.msra.mxu0 0.0
    %1237 = vmatprep.subr.mxu0 0.0
    %1238 = vmatpush1.msra.mxu0 0.0
    %1239 = vmatprep.subr.mxu0 0.0
    %1240 = vmatpush1.msra.mxu0 0.0
    %1241 = vmatprep.subr.mxu0 0.0
    %1242 = vmatpush1.msra.mxu0 0.0
    %1243 = vmatprep.subr.mxu0 0.0
    %1244 = vmatpush1.msra.mxu0 0.0
    %1245 = vmatprep.subr.mxu0 0.0
    %1246 = vmatpush1.msra.mxu0 0.0
    %1247 = vmatprep.subr.mxu0 0.0
    %1248 = vmatpush1.msra.mxu0 0.0
    %1249 = vmatprep.subr.mxu0 0.0
    %1250 = vmatpush1.msra.mxu0 0.0
    %1251 = vmatprep.subr.mxu0 0.0
    %1252 = vmatpush1.msra.mxu0 %v1115
    %1253 = vmatprep.subr.mxu0 0.0
    %1254 = vmatpush1.msra.mxu0 %v1114
    %1255 = vmatprep.subr.mxu0 0.0
    %1256 = vmatpush1.msra.mxu0 %v1113
    %1257 = vmatprep.subr.mxu0 0.0
    %1258 = vmatpush1.msra.mxu0 %v1112
    %1259 = vmatprep.subr.mxu0 0.0
    %1260 = vmatpush2.msra.mxu0 0.0
    %1261 = vmatprep.subr.mxu0 0.0
    %1262 = vmatpush2.msra.mxu0 0.0
    %1263 = vmatprep.subr.mxu0 0.0
    %1264 = vmatpush2.msra.mxu0 0.0
    %1265 = vmatprep.subr.mxu0 0.0
    %1266 = vmatpush2.msra.mxu0 0.0
    %1267 = vmatprep.subr.mxu0 0.0
    %1268 = vmatpush2.msra.mxu0 0.0
    %1269 = vmatprep.subr.mxu0 0.0
    %1270 = vmatpush2.msra.mxu0 0.0
    %1271 = vmatprep.subr.mxu0 0.0
    %1272 = vmatpush2.msra.mxu0 0.0
    %1273 = vmatprep.subr.mxu0 0.0
    %1274 = vmatpush2.msra.mxu0 0.0
    %1275 = vmatprep.subr.mxu0 0.0
    %1276 = vmatpush2.msra.mxu0 0.0
    %1277 = vmatprep.subr.mxu0 0.0
    %1278 = vmatpush2.msra.mxu0 0.0
    %1279 = vmatprep.subr.mxu0 0.0
    %1280 = vmatpush2.msra.mxu0 0.0
    %1281 = vmatprep.subr.mxu0 0.0
    %1282 = vmatpush2.msra.mxu0 0.0
    %1283 = vmatprep.subr.mxu0 0.0
    %1284 = vmatpush2.msra.mxu0 0.0
    %1285 = vmatprep.subr.mxu0 0.0
    %1286 = vmatpush2.msra.mxu0 0.0
    %1287 = vmatprep.subr.mxu0 0.0
    %1288 = vmatpush2.msra.mxu0 0.0
    %1289 = vmatprep.subr.mxu0 0.0
    %1290 = vmatpush2.msra.mxu0 0.0
    %1291 = vmatprep.mubr.f32.mxu0 0.0
    %1292 = vmatmul.mubr.f32.gmra.mxu0 %v1222
    %v1293 = vpop.f32.mrf.mxu0
    %v1294 = vadd.f32 0.0, %v1293
    %v1295 = vpop.f32.mrf.mxu0
    %1296 = vmatprep.mubr.f32.mxu0 0.0
    %1297 = vmatmul.mubr.f32.gmra.mxu0 %v1225
    %v1298 = vpop.f32.mrf.mxu0
    %v1299 = vadd.f32 0.0, %v1298
    %v1300 = vpop.f32.mrf.mxu0
    %1301 = vdwg.mxu0
    %v1303 = vsel %vm123, %v1080, 0
    %v1306 = vsel %vm123, %v1081, 0
    %1308 = vmatprep.subr.mxu0 0.0
    %1309 = vmatpush1.msra.mxu0 0.0
    %1310 = vmatprep.subr.mxu0 0.0
    %1311 = vmatpush1.msra.mxu0 0.0
    %1312 = vmatprep.subr.mxu0 0.0
    %1313 = vmatpush1.msra.mxu0 0.0
    %1314 = vmatprep.subr.mxu0 0.0
    %1315 = vmatpush1.msra.mxu0 0.0
    %1316 = vmatprep.subr.mxu0 0.0
    %1317 = vmatpush1.msra.mxu0 0.0
    %1318 = vmatprep.subr.mxu0 0.0
    %1319 = vmatpush1.msra.mxu0 0.0
    %1320 = vmatprep.subr.mxu0 0.0
    %1321 = vmatpush1.msra.mxu0 0.0
    %1322 = vmatprep.subr.mxu0 0.0
    %1323 = vmatpush1.msra.mxu0 0.0
    %1324 = vmatprep.subr.mxu0 0.0
    %1325 = vmatpush1.msra.mxu0 0.0
    %1326 = vmatprep.subr.mxu0 0.0
    %1327 = vmatpush1.msra.mxu0 0.0
    %1328 = vmatprep.subr.mxu0 0.0
    %1329 = vmatpush1.msra.mxu0 0.0
    %1330 = vmatprep.subr.mxu0 0.0
    %1331 = vmatpush1.msra.mxu0 0.0
    %1332 = vmatprep.subr.mxu0 0.0
    %1333 = vmatpush1.msra.mxu0 %v1119
    %1334 = vmatprep.subr.mxu0 0.0
    %1335 = vmatpush1.msra.mxu0 %v1118
    %1336 = vmatprep.subr.mxu0 0.0
    %1337 = vmatpush1.msra.mxu0 %v1117
    %1338 = vmatprep.subr.mxu0 0.0
    %1339 = vmatpush1.msra.mxu0 %v1116
    %1340 = vmatprep.subr.mxu0 0.0
    %1341 = vmatpush2.msra.mxu0 0.0
    %1342 = vmatprep.subr.mxu0 0.0
    %1343 = vmatpush2.msra.mxu0 0.0
    %1344 = vmatprep.subr.mxu0 0.0
    %1345 = vmatpush2.msra.mxu0 0.0
    %1346 = vmatprep.subr.mxu0 0.0
    %1347 = vmatpush2.msra.mxu0 0.0
    %1348 = vmatprep.subr.mxu0 0.0
    %1349 = vmatpush2.msra.mxu0 0.0
    %1350 = vmatprep.subr.mxu0 0.0
    %1351 = vmatpush2.msra.mxu0 0.0
    %1352 = vmatprep.subr.mxu0 0.0
    %1353 = vmatpush2.msra.mxu0 0.0
    %1354 = vmatprep.subr.mxu0 0.0
    %1355 = vmatpush2.msra.mxu0 0.0
    %1356 = vmatprep.subr.mxu0 0.0
    %1357 = vmatpush2.msra.mxu0 0.0
    %1358 = vmatprep.subr.mxu0 0.0
    %1359 = vmatpush2.msra.mxu0 0.0
    %1360 = vmatprep.subr.mxu0 0.0
    %1361 = vmatpush2.msra.mxu0 0.0
    %1362 = vmatprep.subr.mxu0 0.0
    %1363 = vmatpush2.msra.mxu0 0.0
    %1364 = vmatprep.subr.mxu0 0.0
    %1365 = vmatpush2.msra.mxu0 0.0
    %1366 = vmatprep.subr.mxu0 0.0
    %1367 = vmatpush2.msra.mxu0 0.0
    %1368 = vmatprep.subr.mxu0 0.0
    %1369 = vmatpush2.msra.mxu0 0.0
    %1370 = vmatprep.subr.mxu0 0.0
    %1371 = vmatpush2.msra.mxu0 0.0
    %1372 = vmatprep.mubr.f32.mxu0 0.0
    %1373 = vmatmul.mubr.f32.gmra.mxu0 %v1303
    %v1374 = vpop.f32.mrf.mxu0
    %v1375 = vadd.f32 0.0, %v1374
    %v1376 = vpop.f32.mrf.mxu0
    %1377 = vmatprep.mubr.f32.mxu0 0.0
    %1378 = vmatmul.mubr.f32.gmra.mxu0 %v1306
    %v1379 = vpop.f32.mrf.mxu0
    %v1380 = vadd.f32 0.0, %v1379
    %v1381 = vpop.f32.mrf.mxu0
    %1382 = vdwg.mxu0
    %v1384 = vsel %vm123, %v1082, 0
    %v1387 = vsel %vm123, %v1083, 0
    %1389 = vmatprep.subr.mxu0 0.0
    %1390 = vmatpush1.msra.mxu0 0.0
    %1391 = vmatprep.subr.mxu0 0.0
    %1392 = vmatpush1.msra.mxu0 0.0
    %1393 = vmatprep.subr.mxu0 0.0
    %1394 = vmatpush1.msra.mxu0 0.0
    %1395 = vmatprep.subr.mxu0 0.0
    %1396 = vmatpush1.msra.mxu0 0.0
    %1397 = vmatprep.subr.mxu0 0.0
    %1398 = vmatpush1.msra.mxu0 0.0
    %1399 = vmatprep.subr.mxu0 0.0
    %1400 = vmatpush1.msra.mxu0 0.0
    %1401 = vmatprep.subr.mxu0 0.0
    %1402 = vmatpush1.msra.mxu0 0.0
    %1403 = vmatprep.subr.mxu0 0.0
    %1404 = vmatpush1.msra.mxu0 0.0
    %1405 = vmatprep.subr.mxu0 0.0
    %1406 = vmatpush1.msra.mxu0 0.0
    %1407 = vmatprep.subr.mxu0 0.0
    %1408 = vmatpush1.msra.mxu0 0.0
    %1409 = vmatprep.subr.mxu0 0.0
    %1410 = vmatpush1.msra.mxu0 0.0
    %1411 = vmatprep.subr.mxu0 0.0
    %1412 = vmatpush1.msra.mxu0 0.0
    %1413 = vmatprep.subr.mxu0 0.0
    %1414 = vmatpush1.msra.mxu0 %v1123
    %1415 = vmatprep.subr.mxu0 0.0
    %1416 = vmatpush1.msra.mxu0 %v1122
    %1417 = vmatprep.subr.mxu0 0.0
    %1418 = vmatpush1.msra.mxu0 %v1121
    %1419 = vmatprep.subr.mxu0 0.0
    %1420 = vmatpush1.msra.mxu0 %v1120
    %1421 = vmatprep.subr.mxu0 0.0
    %1422 = vmatpush2.msra.mxu0 0.0
    %1423 = vmatprep.subr.mxu0 0.0
    %1424 = vmatpush2.msra.mxu0 0.0
    %1425 = vmatprep.subr.mxu0 0.0
    %1426 = vmatpush2.msra.mxu0 0.0
    %1427 = vmatprep.subr.mxu0 0.0
    %1428 = vmatpush2.msra.mxu0 0.0
    %1429 = vmatprep.subr.mxu0 0.0
    %1430 = vmatpush2.msra.mxu0 0.0
    %1431 = vmatprep.subr.mxu0 0.0
    %1432 = vmatpush2.msra.mxu0 0.0
    %1433 = vmatprep.subr.mxu0 0.0
    %1434 = vmatpush2.msra.mxu0 0.0
    %1435 = vmatprep.subr.mxu0 0.0
    %1436 = vmatpush2.msra.mxu0 0.0
    %1437 = vmatprep.subr.mxu0 0.0
    %1438 = vmatpush2.msra.mxu0 0.0
    %1439 = vmatprep.subr.mxu0 0.0
    %1440 = vmatpush2.msra.mxu0 0.0
    %1441 = vmatprep.subr.mxu0 0.0
    %1442 = vmatpush2.msra.mxu0 0.0
    %1443 = vmatprep.subr.mxu0 0.0
    %1444 = vmatpush2.msra.mxu0 0.0
    %1445 = vmatprep.subr.mxu0 0.0
    %1446 = vmatpush2.msra.mxu0 0.0
    %1447 = vmatprep.subr.mxu0 0.0
    %1448 = vmatpush2.msra.mxu0 0.0
    %1449 = vmatprep.subr.mxu0 0.0
    %1450 = vmatpush2.msra.mxu0 0.0
    %1451 = vmatprep.subr.mxu0 0.0
    %1452 = vmatpush2.msra.mxu0 0.0
    %1453 = vmatprep.mubr.f32.mxu0 0.0
    %1454 = vmatmul.mubr.f32.gmra.mxu0 %v1384
    %v1455 = vpop.f32.mrf.mxu0
    %v1456 = vadd.f32 0.0, %v1455
    %v1457 = vpop.f32.mrf.mxu0
    %1458 = vmatprep.mubr.f32.mxu0 0.0
    %1459 = vmatmul.mubr.f32.gmra.mxu0 %v1387
    %v1460 = vpop.f32.mrf.mxu0
    %v1461 = vadd.f32 0.0, %v1460
    %v1462 = vpop.f32.mrf.mxu0
    %1463 = vdwg.mxu0
    %v1465 = vsel %vm123, %v1084, 0
    %v1468 = vsel %vm123, %v1085, 0
    %1470 = vmatprep.subr.mxu0 0.0
    %1471 = vmatpush1.msra.mxu0 0.0
    %1472 = vmatprep.subr.mxu0 0.0
    %1473 = vmatpush1.msra.mxu0 0.0
    %1474 = vmatprep.subr.mxu0 0.0
    %1475 = vmatpush1.msra.mxu0 0.0
    %1476 = vmatprep.subr.mxu0 0.0
    %1477 = vmatpush1.msra.mxu0 0.0
    %1478 = vmatprep.subr.mxu0 0.0
    %1479 = vmatpush1.msra.mxu0 0.0
    %1480 = vmatprep.subr.mxu0 0.0
    %1481 = vmatpush1.msra.mxu0 0.0
    %1482 = vmatprep.subr.mxu0 0.0
    %1483 = vmatpush1.msra.mxu0 0.0
    %1484 = vmatprep.subr.mxu0 0.0
    %1485 = vmatpush1.msra.mxu0 0.0
    %1486 = vmatprep.subr.mxu0 0.0
    %1487 = vmatpush1.msra.mxu0 0.0
    %1488 = vmatprep.subr.mxu0 0.0
    %1489 = vmatpush1.msra.mxu0 0.0
    %1490 = vmatprep.subr.mxu0 0.0
    %1491 = vmatpush1.msra.mxu0 0.0
    %1492 = vmatprep.subr.mxu0 0.0
    %1493 = vmatpush1.msra.mxu0 0.0
    %1494 = vmatprep.subr.mxu0 0.0
    %1495 = vmatpush1.msra.mxu0 %v1127
    %1496 = vmatprep.subr.mxu0 0.0
    %1497 = vmatpush1.msra.mxu0 %v1126
    %1498 = vmatprep.subr.mxu0 0.0
    %1499 = vmatpush1.msra.mxu0 %v1125
    %1500 = vmatprep.subr.mxu0 0.0
    %1501 = vmatpush1.msra.mxu0 %v1124
    %1502 = vmatprep.subr.mxu0 0.0
    %1503 = vmatpush2.msra.mxu0 0.0
    %1504 = vmatprep.subr.mxu0 0.0
    %1505 = vmatpush2.msra.mxu0 0.0
    %1506 = vmatprep.subr.mxu0 0.0
    %1507 = vmatpush2.msra.mxu0 0.0
    %1508 = vmatprep.subr.mxu0 0.0
    %1509 = vmatpush2.msra.mxu0 0.0
    %1510 = vmatprep.subr.mxu0 0.0
    %1511 = vmatpush2.msra.mxu0 0.0
    %1512 = vmatprep.subr.mxu0 0.0
    %1513 = vmatpush2.msra.mxu0 0.0
    %1514 = vmatprep.subr.mxu0 0.0
    %1515 = vmatpush2.msra.mxu0 0.0
    %1516 = vmatprep.subr.mxu0 0.0
    %1517 = vmatpush2.msra.mxu0 0.0
    %1518 = vmatprep.subr.mxu0 0.0
    %1519 = vmatpush2.msra.mxu0 0.0
    %1520 = vmatprep.subr.mxu0 0.0
    %1521 = vmatpush2.msra.mxu0 0.0
    %1522 = vmatprep.subr.mxu0 0.0
    %1523 = vmatpush2.msra.mxu0 0.0
    %1524 = vmatprep.subr.mxu0 0.0
    %1525 = vmatpush2.msra.mxu0 0.0
    %1526 = vmatprep.subr.mxu0 0.0
    %1527 = vmatpush2.msra.mxu0 0.0
    %1528 = vmatprep.subr.mxu0 0.0
    %1529 = vmatpush2.msra.mxu0 0.0
    %1530 = vmatprep.subr.mxu0 0.0
    %1531 = vmatpush2.msra.mxu0 0.0
    %1532 = vmatprep.subr.mxu0 0.0
    %1533 = vmatpush2.msra.mxu0 0.0
    %1534 = vmatprep.mubr.f32.mxu0 0.0
    %1535 = vmatmul.mubr.f32.gmra.mxu0 %v1465
    %v1536 = vpop.f32.mrf.mxu0
    %v1537 = vadd.f32 0.0, %v1536
    %v1538 = vpop.f32.mrf.mxu0
    %1539 = vmatprep.mubr.f32.mxu0 0.0
    %1540 = vmatmul.mubr.f32.gmra.mxu0 %v1468
    %v1541 = vpop.f32.mrf.mxu0
    %v1542 = vadd.f32 0.0, %v1541
    %v1543 = vpop.f32.mrf.mxu0
    %1544 = vdwg.mxu0
    %v1546 = vsel %vm123, %v1086, 0
    %v1549 = vsel %vm123, %v1087, 0
    %1551 = vmatprep.subr.mxu0 0.0
    %1552 = vmatpush1.msra.mxu0 0.0
    %1553 = vmatprep.subr.mxu0 0.0
    %1554 = vmatpush1.msra.mxu0 0.0
    %1555 = vmatprep.subr.mxu0 0.0
    %1556 = vmatpush1.msra.mxu0 0.0
    %1557 = vmatprep.subr.mxu0 0.0
    %1558 = vmatpush1.msra.mxu0 0.0
    %1559 = vmatprep.subr.mxu0 0.0
    %1560 = vmatpush1.msra.mxu0 0.0
    %1561 = vmatprep.subr.mxu0 0.0
    %1562 = vmatpush1.msra.mxu0 0.0
    %1563 = vmatprep.subr.mxu0 0.0
    %1564 = vmatpush1.msra.mxu0 0.0
    %1565 = vmatprep.subr.mxu0 0.0
    %1566 = vmatpush1.msra.mxu0 0.0
    %1567 = vmatprep.subr.mxu0 0.0
    %1568 = vmatpush1.msra.mxu0 0.0
    %1569 = vmatprep.subr.mxu0 0.0
    %1570 = vmatpush1.msra.mxu0 0.0
    %1571 = vmatprep.subr.mxu0 0.0
    %1572 = vmatpush1.msra.mxu0 0.0
    %1573 = vmatprep.subr.mxu0 0.0
    %1574 = vmatpush1.msra.mxu0 0.0
    %1575 = vmatprep.subr.mxu0 0.0
    %1576 = vmatpush1.msra.mxu0 %v1131
    %1577 = vmatprep.subr.mxu0 0.0
    %1578 = vmatpush1.msra.mxu0 %v1130
    %1579 = vmatprep.subr.mxu0 0.0
    %1580 = vmatpush1.msra.mxu0 %v1129
    %1581 = vmatprep.subr.mxu0 0.0
    %1582 = vmatpush1.msra.mxu0 %v1128
    %1583 = vmatprep.subr.mxu0 0.0
    %1584 = vmatpush2.msra.mxu0 0.0
    %1585 = vmatprep.subr.mxu0 0.0
    %1586 = vmatpush2.msra.mxu0 0.0
    %1587 = vmatprep.subr.mxu0 0.0
    %1588 = vmatpush2.msra.mxu0 0.0
    %1589 = vmatprep.subr.mxu0 0.0
    %1590 = vmatpush2.msra.mxu0 0.0
    %1591 = vmatprep.subr.mxu0 0.0
    %1592 = vmatpush2.msra.mxu0 0.0
    %1593 = vmatprep.subr.mxu0 0.0
    %1594 = vmatpush2.msra.mxu0 0.0
    %1595 = vmatprep.subr.mxu0 0.0
    %1596 = vmatpush2.msra.mxu0 0.0
    %1597 = vmatprep.subr.mxu0 0.0
    %1598 = vmatpush2.msra.mxu0 0.0
    %1599 = vmatprep.subr.mxu0 0.0
    %1600 = vmatpush2.msra.mxu0 0.0
    %1601 = vmatprep.subr.mxu0 0.0
    %1602 = vmatpush2.msra.mxu0 0.0
    %1603 = vmatprep.subr.mxu0 0.0
    %1604 = vmatpush2.msra.mxu0 0.0
    %1605 = vmatprep.subr.mxu0 0.0
    %1606 = vmatpush2.msra.mxu0 0.0
    %1607 = vmatprep.subr.mxu0 0.0
    %1608 = vmatpush2.msra.mxu0 0.0
    %1609 = vmatprep.subr.mxu0 0.0
    %1610 = vmatpush2.msra.mxu0 0.0
    %1611 = vmatprep.subr.mxu0 0.0
    %1612 = vmatpush2.msra.mxu0 0.0
    %1613 = vmatprep.subr.mxu0 0.0
    %1614 = vmatpush2.msra.mxu0 0.0
    %1615 = vmatprep.mubr.f32.mxu0 0.0
    %1616 = vmatmul.mubr.f32.gmra.mxu0 %v1546
    %v1617 = vpop.f32.mrf.mxu0
    %v1618 = vadd.f32 0.0, %v1617
    %v1619 = vpop.f32.mrf.mxu0
    %1620 = vmatprep.mubr.f32.mxu0 0.0
    %1621 = vmatmul.mubr.f32.gmra.mxu0 %v1549
    %v1622 = vpop.f32.mrf.mxu0
    %v1623 = vadd.f32 0.0, %v1622
    %v1624 = vpop.f32.mrf.mxu0
    %1625 = vdwg.mxu0
    %v1627 = vsel %vm123, %v1088, 0
    %v1630 = vsel %vm123, %v1089, 0
    %1632 = vmatprep.subr.mxu0 0.0
    %1633 = vmatpush1.msra.mxu0 0.0
    %1634 = vmatprep.subr.mxu0 0.0
    %1635 = vmatpush1.msra.mxu0 0.0
    %1636 = vmatprep.subr.mxu0 0.0
    %1637 = vmatpush1.msra.mxu0 0.0
    %1638 = vmatprep.subr.mxu0 0.0
    %1639 = vmatpush1.msra.mxu0 0.0
    %1640 = vmatprep.subr.mxu0 0.0
    %1641 = vmatpush1.msra.mxu0 0.0
    %1642 = vmatprep.subr.mxu0 0.0
    %1643 = vmatpush1.msra.mxu0 0.0
    %1644 = vmatprep.subr.mxu0 0.0
    %1645 = vmatpush1.msra.mxu0 0.0
    %1646 = vmatprep.subr.mxu0 0.0
    %1647 = vmatpush1.msra.mxu0 0.0
    %1648 = vmatprep.subr.mxu0 0.0
    %1649 = vmatpush1.msra.mxu0 0.0
    %1650 = vmatprep.subr.mxu0 0.0
    %1651 = vmatpush1.msra.mxu0 0.0
    %1652 = vmatprep.subr.mxu0 0.0
    %1653 = vmatpush1.msra.mxu0 0.0
    %1654 = vmatprep.subr.mxu0 0.0
    %1655 = vmatpush1.msra.mxu0 0.0
    %1656 = vmatprep.subr.mxu0 0.0
    %1657 = vmatpush1.msra.mxu0 %v1135
    %1658 = vmatprep.subr.mxu0 0.0
    %1659 = vmatpush1.msra.mxu0 %v1134
    %1660 = vmatprep.subr.mxu0 0.0
    %1661 = vmatpush1.msra.mxu0 %v1133
    %1662 = vmatprep.subr.mxu0 0.0
    %1663 = vmatpush1.msra.mxu0 %v1132
    %1664 = vmatprep.subr.mxu0 0.0
    %1665 = vmatpush2.msra.mxu0 0.0
    %1666 = vmatprep.subr.mxu0 0.0
    %1667 = vmatpush2.msra.mxu0 0.0
    %1668 = vmatprep.subr.mxu0 0.0
    %1669 = vmatpush2.msra.mxu0 0.0
    %1670 = vmatprep.subr.mxu0 0.0
    %1671 = vmatpush2.msra.mxu0 0.0
    %1672 = vmatprep.subr.mxu0 0.0
    %1673 = vmatpush2.msra.mxu0 0.0
    %1674 = vmatprep.subr.mxu0 0.0
    %1675 = vmatpush2.msra.mxu0 0.0
    %1676 = vmatprep.subr.mxu0 0.0
    %1677 = vmatpush2.msra.mxu0 0.0
    %1678 = vmatprep.subr.mxu0 0.0
    %1679 = vmatpush2.msra.mxu0 0.0
    %1680 = vmatprep.subr.mxu0 0.0
    %1681 = vmatpush2.msra.mxu0 0.0
    %1682 = vmatprep.subr.mxu0 0.0
    %1683 = vmatpush2.msra.mxu0 0.0
    %1684 = vmatprep.subr.mxu0 0.0
    %1685 = vmatpush2.msra.mxu0 0.0
    %1686 = vmatprep.subr.mxu0 0.0
    %1687 = vmatpush2.msra.mxu0 0.0
    %1688 = vmatprep.subr.mxu0 0.0
    %1689 = vmatpush2.msra.mxu0 0.0
    %1690 = vmatprep.subr.mxu0 0.0
    %1691 = vmatpush2.msra.mxu0 0.0
    %1692 = vmatprep.subr.mxu0 0.0
    %1693 = vmatpush2.msra.mxu0 0.0
    %1694 = vmatprep.subr.mxu0 0.0
    %1695 = vmatpush2.msra.mxu0 0.0
    %1696 = vmatprep.mubr.f32.mxu0 0.0
    %1697 = vmatmul.mubr.f32.gmra.mxu0 %v1627
    %v1698 = vpop.f32.mrf.mxu0
    %v1699 = vadd.f32 0.0, %v1698
    %v1700 = vpop.f32.mrf.mxu0
    %1701 = vmatprep.mubr.f32.mxu0 0.0
    %1702 = vmatmul.mubr.f32.gmra.mxu0 %v1630
    %v1703 = vpop.f32.mrf.mxu0
    %v1704 = vadd.f32 0.0, %v1703
    %v1705 = vpop.f32.mrf.mxu0
    %1706 = vdwg.mxu0
    %v1708 = vsel %vm123, %v1090, 0
    %v1711 = vsel %vm123, %v1091, 0
    %1713 = vmatprep.subr.mxu0 0.0
    %1714 = vmatpush1.msra.mxu0 0.0
    %1715 = vmatprep.subr.mxu0 0.0
    %1716 = vmatpush1.msra.mxu0 0.0
    %1717 = vmatprep.subr.mxu0 0.0
    %1718 = vmatpush1.msra.mxu0 0.0
    %1719 = vmatprep.subr.mxu0 0.0
    %1720 = vmatpush1.msra.mxu0 0.0
    %1721 = vmatprep.subr.mxu0 0.0
    %1722 = vmatpush1.msra.mxu0 0.0
    %1723 = vmatprep.subr.mxu0 0.0
    %1724 = vmatpush1.msra.mxu0 0.0
    %1725 = vmatprep.subr.mxu0 0.0
    %1726 = vmatpush1.msra.mxu0 0.0
    %1727 = vmatprep.subr.mxu0 0.0
    %1728 = vmatpush1.msra.mxu0 0.0
    %1729 = vmatprep.subr.mxu0 0.0
    %1730 = vmatpush1.msra.mxu0 0.0
    %1731 = vmatprep.subr.mxu0 0.0
    %1732 = vmatpush1.msra.mxu0 0.0
    %1733 = vmatprep.subr.mxu0 0.0
    %1734 = vmatpush1.msra.mxu0 0.0
    %1735 = vmatprep.subr.mxu0 0.0
    %1736 = vmatpush1.msra.mxu0 0.0
    %1737 = vmatprep.subr.mxu0 0.0
    %1738 = vmatpush1.msra.mxu0 %v1139
    %1739 = vmatprep.subr.mxu0 0.0
    %1740 = vmatpush1.msra.mxu0 %v1138
    %1741 = vmatprep.subr.mxu0 0.0
    %1742 = vmatpush1.msra.mxu0 %v1137
    %1743 = vmatprep.subr.mxu0 0.0
    %1744 = vmatpush1.msra.mxu0 %v1136
    %1745 = vmatprep.subr.mxu0 0.0
    %1746 = vmatpush2.msra.mxu0 0.0
    %1747 = vmatprep.subr.mxu0 0.0
    %1748 = vmatpush2.msra.mxu0 0.0
    %1749 = vmatprep.subr.mxu0 0.0
    %1750 = vmatpush2.msra.mxu0 0.0
    %1751 = vmatprep.subr.mxu0 0.0
    %1752 = vmatpush2.msra.mxu0 0.0
    %1753 = vmatprep.subr.mxu0 0.0
    %1754 = vmatpush2.msra.mxu0 0.0
    %1755 = vmatprep.subr.mxu0 0.0
    %1756 = vmatpush2.msra.mxu0 0.0
    %1757 = vmatprep.subr.mxu0 0.0
    %1758 = vmatpush2.msra.mxu0 0.0
    %1759 = vmatprep.subr.mxu0 0.0
    %1760 = vmatpush2.msra.mxu0 0.0
    %1761 = vmatprep.subr.mxu0 0.0
    %1762 = vmatpush2.msra.mxu0 0.0
    %1763 = vmatprep.subr.mxu0 0.0
    %1764 = vmatpush2.msra.mxu0 0.0
    %1765 = vmatprep.subr.mxu0 0.0
    %1766 = vmatpush2.msra.mxu0 0.0
    %1767 = vmatprep.subr.mxu0 0.0
    %1768 = vmatpush2.msra.mxu0 0.0
    %1769 = vmatprep.subr.mxu0 0.0
    %1770 = vmatpush2.msra.mxu0 0.0
    %1771 = vmatprep.subr.mxu0 0.0
    %1772 = vmatpush2.msra.mxu0 0.0
    %1773 = vmatprep.subr.mxu0 0.0
    %1774 = vmatpush2.msra.mxu0 0.0
    %1775 = vmatprep.subr.mxu0 0.0
    %1776 = vmatpush2.msra.mxu0 0.0
    %1777 = vmatprep.mubr.f32.mxu0 0.0
    %1778 = vmatmul.mubr.f32.gmra.mxu0 %v1708
    %v1779 = vpop.f32.mrf.mxu0
    %v1780 = vadd.f32 0.0, %v1779
    %v1781 = vpop.f32.mrf.mxu0
    %1782 = vmatprep.mubr.f32.mxu0 0.0
    %1783 = vmatmul.mubr.f32.gmra.mxu0 %v1711
    %v1784 = vpop.f32.mrf.mxu0
    %v1785 = vadd.f32 0.0, %v1784
    %v1786 = vpop.f32.mrf.mxu0
    %1787 = vdwg.mxu0
    %1788 = vst.msk [vmem:[#allocation8] sm:$0xff] %vm123, %v1213
    %1789 = vst.msk [vmem:[#allocation8 + $0x8] sm:$0xff] %vm123, %v1218
    %1790 = vst.msk [vmem:[#allocation8 + $0x10] sm:$0xff] %vm123, %v1294
    %1791 = vst.msk [vmem:[#allocation8 + $0x18] sm:$0xff] %vm123, %v1299
    %1792 = vst.msk [vmem:[#allocation8 + $0x20] sm:$0xff] %vm123, %v1375
    %1793 = vst.msk [vmem:[#allocation8 + $0x28] sm:$0xff] %vm123, %v1380
    %1794 = vst.msk [vmem:[#allocation8 + $0x30] sm:$0xff] %vm123, %v1456
    %1795 = vst.msk [vmem:[#allocation8 + $0x38] sm:$0xff] %vm123, %v1461
    %1796 = vst.msk [vmem:[#allocation8 + $0x40] sm:$0xff] %vm123, %v1537
    %1797 = vst.msk [vmem:[#allocation8 + $0x48] sm:$0xff] %vm123, %v1542
    %1798 = vst.msk [vmem:[#allocation8 + $0x50] sm:$0xff] %vm123, %v1618
    %1799 = vst.msk [vmem:[#allocation8 + $0x58] sm:$0xff] %vm123, %v1623
    %1800 = vst.msk [vmem:[#allocation8 + $0x60] sm:$0xff] %vm123, %v1699
    %1801 = vst.msk [vmem:[#allocation8 + $0x68] sm:$0xff] %vm123, %v1704
    %1802 = vst.msk [vmem:[#allocation8 + $0x70] sm:$0xff] %vm123, %v1780
    %1803 = vst.msk [vmem:[#allocation8 + $0x78] sm:$0xff] %vm123, %v1785
    // Predicated region
    $region26: #{tpu_custom_call.1} parent=1 // pred_check
      _
    $region27: #{tpu_custom_call.1} parent=1 // pred_check_branch
      %1805 = sbr.rel (0) target = $region29
    $region28: #{tpu_custom_call.1} parent=1 // pred_region
      %s1807 = ssub.s32 2048, 2048
      %1808 = vsyncadd [#allocation4], %s1807
      %s1809 = sshll.u32 [#allocation8], 4
      %s1810 = int_to_ptr.vmem [resolvable:$true] %s1809
      %1815 = dma.vmem_to_hbm [thread:$0]  %s1810, 2048, %s3, [#allocation4], 128, 128, 8
    $region29: #{tpu_custom_call.1} parent=1 // pred_fallthru
      _
    // Predicated region
    $region30: #{tpu_custom_call.1} parent=1 // pred_check
      _
    $region31: #{tpu_custom_call.1} parent=1 // pred_check_branch
      %1817 = sbr.rel (0) target = $region33
    $region32: #{tpu_custom_call.1} parent=1 // pred_region
      %s1819 = ssub.s32 2048, 2048
      %1820 = vsyncadd [#allocation10], %s1819
      %s1821 = sshll.u32 [#allocation9], 4
      %s1822 = int_to_ptr.vmem [resolvable:$true] %s1821
      %1827 = dma.vmem_to_hbm [thread:$0]  %s1822, 2048, %s4, [#allocation10], 128, 128, 8
    $region33: #{tpu_custom_call.1} parent=1 // pred_fallthru
      _
    // Predicated region
    $region34: #{tpu_custom_call.1} parent=1 // pred_check
      _
    $region35: #{tpu_custom_call.1} parent=1 // pred_check_branch
      %1829 = sbr.rel (0) target = $region37
    $region36: #{tpu_custom_call.1} parent=1 // pred_region
      %1830 = dma.done [#allocation4], 2048
    $region37: #{tpu_custom_call.1} parent=1 // pred_fallthru
      _
    // Predicated region
    $region38: #{tpu_custom_call.1} parent=1 // pred_check
      _
    $region39: #{tpu_custom_call.1} parent=1 // pred_check_branch
      %1832 = sbr.rel (0) target = $region41
    $region40: #{tpu_custom_call.1} parent=1 // pred_region
      %1833 = dma.done [#allocation10], 2048
    $region41: #{tpu_custom_call.1} parent=1 // pred_fallthru
      _
    %1834 = vsyncpa [#allocation3], 1
    %1835 = vsyncpa [#allocation6], 1
    %1836 = vsyncpa [#allocation4], 1
    %1837 = vsyncpa [#allocation10], 1

</llo_original>
